<compile_context>
chip_gen: v7x
topology: tpu7x:2x2x1
jax: 0.10.0
libtpu: 0.0.40
codegen_flags: <defaults>
</compile_context>

<pallas_src>
import functools

import jax
import jax.numpy as jnp
from jax.experimental import pallas as pl
from jax.experimental.pallas import tpu as pltpu

_TARGET_BLOCK_BYTES = 8 << 20   # aim for ~8 MiB input blocks (amortize ~0.35us/step)
_SMALL_INPUT_BYTES = 256 << 10  # below this, plain XLA beats kernel launch cost


def _rms_norm_kernel(x_ref, w_ref, o_ref, *, eps: float, inv_dim: float):
    # x_ref: (tile_rows, dim), w_ref: (1, dim) f32, o_ref: (tile_rows, dim)
    xf = x_ref[...].astype(jnp.float32)
    # sum(x*x) * (1/dim) == mean(x*x); scalar multiply instead of a divide.
    ms = jnp.sum(xf * xf, axis=-1, keepdims=True) * inv_dim
    inv = jax.lax.rsqrt(ms + eps)
    # Re-load / re-cast x for the scale step instead of reusing `xf`, so the
    # whole-tile f32 copy is not kept live across the reduction (smaller VMEM
    # temporaries; VMEM load slots are far from saturated in this DMA-bound
    # kernel, so the reload is free).
    y = x_ref[...].astype(jnp.float32) * inv * w_ref[...].astype(jnp.float32)
    o_ref[...] = y.astype(o_ref.dtype)


def _vmem_budget_bytes() -> int:
    cap = 64 << 20
    try:
        cap = int(pltpu.get_tpu_info().vmem_capacity_bytes)
    except Exception:
        pass
    # Clamp to the per-TensorCore physical minimum across generations (v7x has
    # 64 MiB/TC and get_tpu_info may report chip-level capacity there). The
    # byte-based tile target never needs more than this anyway.
    return min(cap, 64 << 20)


def _pick_tile_rows(rows: int, dim: int, itemsize: int, vmem_limit: int) -> int:
    """Byte-targeted, sublane-aligned row tile that fits the VMEM budget."""
    sublane = max(8, 32 // itemsize)  # 8 for f32, 16 for bf16, 32 for int8/fp8
    # VMEM per row: double-buffered input + output blocks in x.dtype
    # (4 * itemsize) plus roughly one f32 temporary (4 B) for the scaled tile.
    bytes_per_row = dim * (4 * itemsize + 4)
    max_rows = max(sublane, int(vmem_limit * 0.8) // max(bytes_per_row, 1))
    # Byte-based target: block big enough to sit on the HBM-roofline plateau.
    target_rows = max(sublane, -(-_TARGET_BLOCK_BYTES // max(dim * itemsize, 1)))
    rows_rounded = -(-rows // sublane) * sublane
    tile = min(target_rows, max_rows, rows_rounded)
    tile = max(sublane, (tile // sublane) * sublane)
    return tile


def _rms_norm_xla(x, weight, eps):
    """Plain-XLA path (also the reference): used for tiny inputs."""
    xf = x.astype(jnp.float32)
    ms = jnp.mean(xf * xf, axis=-1, keepdims=True)
    y = xf * jax.lax.rsqrt(ms + eps)
    if weight is not None:
        y = y * jnp.asarray(weight).astype(jnp.float32)
    return y.astype(x.dtype)


def rms_norm(x: jax.Array,
             weight: jax.Array | None,
             eps: float = 1e-6,
             tile_rows: int | None = None) -> jax.Array:
    """RMSNorm over the last axis of x (any leading shape)."""
    orig_shape = x.shape
    dim = orig_shape[-1]
    itemsize = jnp.dtype(x.dtype).itemsize

    # Tiny inputs: kernel launch + pipeline prologue dominate — use plain XLA.
    if x.size * itemsize < _SMALL_INPUT_BYTES:
        return _rms_norm_xla(x, weight, eps)

    x2d = x.reshape(-1, dim)
    rows = x2d.shape[0]

    # Weight stays in f32 for the in-kernel multiply (no pre-quantization).
    if weight is None:
        w = jnp.ones((1, dim), dtype=jnp.float32)
    else:
        w = jnp.asarray(weight).reshape(1, dim).astype(jnp.float32)

    vmem_limit = int(_vmem_budget_bytes() * 0.7)
    if tile_rows is None:
        tile_rows = _pick_tile_rows(rows, dim, itemsize, vmem_limit)

    # No row padding: the ragged last block is handled by Pallas (OOB rows are
    # independent garbage whose writes are discarded).
    grid = (pl.cdiv(rows, tile_rows),)

    out = pl.pallas_call(
        functools.partial(_rms_norm_kernel, eps=float(eps), inv_dim=1.0 / dim),
        out_shape=jax.ShapeDtypeStruct((rows, dim), x.dtype),
        grid_spec=pltpu.PrefetchScalarGridSpec(
            num_scalar_prefetch=0,
            grid=grid,
            in_specs=[
                # Last block dim == full feature dim: legal for any dim,
                # no wrapper-side padding needed.
                pl.BlockSpec((tile_rows, dim), lambda i: (i, 0)),
                pl.BlockSpec((1, dim), lambda i: (0, 0)),  # weight VMEM-resident
            ],
            out_specs=pl.BlockSpec((tile_rows, dim), lambda i: (i, 0)),
        ),
        compiler_params=pltpu.CompilerParams(
            dimension_semantics=("parallel",),
            vmem_limit_bytes=vmem_limit,
        ),
    )(x2d, w)

    return out.reshape(orig_shape)


if __name__ == "__main__":
    key = jax.random.PRNGKey(0)
    k1, k2, k3, k4, kw = jax.random.split(key, 5)
    eps = 1e-6

    # 1) Small shape implied by the module (batch=2, seq=8, dim=32):
    #    exercises the small-input XLA fallback path.
    x = jax.random.normal(k1, (2, 8, 32), dtype=jnp.float32)
    weight = jnp.ones((32,), dtype=jnp.float32)  # nn.Parameter(torch.ones(dim))
    out = jax.block_until_ready(rms_norm(x, weight, eps=eps))
    ref = _rms_norm_xla(x, weight, eps)
    assert out.shape == x.shape and out.dtype == x.dtype
    assert jnp.allclose(out, ref, atol=1e-5, rtol=1e-5)

    # 2) Kernel path with dim NOT a multiple of 128 (no padding, full-dim block).
    x2 = jax.random.normal(k2, (8, 128, 96), dtype=jnp.float32)
    w2 = 1.0 + 0.1 * jax.random.normal(kw, (96,), dtype=jnp.float32)
    out2 = jax.block_until_ready(rms_norm(x2, w2, eps=eps))
    ref2 = _rms_norm_xla(x2, w2, eps)
    assert jnp.allclose(out2, ref2, atol=1e-5, rtol=1e-5)

    # 3) Kernel path, elementwise_affine=False (weight is None).
    x3 = jax.random.normal(k3, (4, 256, 256), dtype=jnp.float32)
    out3 = jax.block_until_ready(rms_norm(x3, None, eps=eps))
    ref3 = _rms_norm_xla(x3, None, eps)
    assert jnp.allclose(out3, ref3, atol=1e-5, rtol=1e-5)

    # 4) Kernel path in bf16 with an f32 weight (mixed-dtype scale).
    x4 = jax.random.normal(k4, (4, 512, 256), dtype=jnp.bfloat16)
    w4 = 1.0 + 0.1 * jax.random.normal(kw, (256,), dtype=jnp.float32)
    out4 = jax.block_until_ready(rms_norm(x4, w4, eps=eps))
    ref4 = _rms_norm_xla(x4, w4, eps)
    assert out4.dtype == jnp.bfloat16
    assert jnp.allclose(out4.astype(jnp.float32), ref4.astype(jnp.float32),
                        atol=2e-2, rtol=2e-2)

    print("KERNEL_OK")
</pallas_src>

<mosaic_0001>
module attributes {stable_mosaic.version = 11 : i64} {
  func.func @_rms_norm_kernel(%arg0: i32, %arg1: memref<1024x96xf32, #tpu.memory_space<vmem>>, %arg2: memref<1x96xf32, #tpu.memory_space<vmem>>, %arg3: memref<1024x96xf32, #tpu.memory_space<vmem>>) attributes {dimension_semantics = [#tpu.dimension_semantics<parallel>], iteration_bounds = array<i64: 1>, scalar_prefetch = 0 : i64, scratch_operands = 0 : i64, tpu.core_type = #tpu.core_type<tc>, window_params = [{transform_indices = @transform_0, window_bounds = array<i64: 1024, 96>}, {pipeline_mode = #tpu.pipeline_mode<synchronous>, transform_indices = @transform_1, window_bounds = array<i64: 1, 96>}, {transform_indices = @transform_2, window_bounds = array<i64: 1024, 96>}]} {
    %c0 = arith.constant 0 : index
    %c0_0 = arith.constant 0 : index
    %0 = vector.load %arg1[%c0, %c0_0] : memref<1024x96xf32, #tpu.memory_space<vmem>>, vector<1024x96xf32>
    %1 = arith.mulf %0, %0 : vector<1024x96xf32>
    %cst = arith.constant dense<0.000000e+00> : vector<1024xf32>
    %2 = vector.multi_reduction <add>, %1, %cst [1] : vector<1024x96xf32> to vector<1024xf32>
    %3 = vector.shape_cast %2 : vector<1024xf32> to vector<1024x1xf32>
    %cst_1 = arith.constant 0.010416667 : f32
    %4 = vector.broadcast %cst_1 : f32 to vector<1024x1xf32>
    %5 = arith.mulf %3, %4 : vector<1024x1xf32>
    %cst_2 = arith.constant 9.99999997E-7 : f32
    %6 = vector.broadcast %cst_2 : f32 to vector<1024x1xf32>
    %7 = arith.addf %5, %6 : vector<1024x1xf32>
    %8 = math.rsqrt %7 : vector<1024x1xf32>
    %c0_3 = arith.constant 0 : index
    %c0_4 = arith.constant 0 : index
    %9 = vector.load %arg1[%c0_3, %c0_4] : memref<1024x96xf32, #tpu.memory_space<vmem>>, vector<1024x96xf32>
    %10 = vector.broadcast %8 : vector<1024x1xf32> to vector<1024x96xf32>
    %11 = arith.mulf %9, %10 : vector<1024x96xf32>
    %c0_5 = arith.constant 0 : index
    %c0_6 = arith.constant 0 : index
    %12 = vector.load %arg2[%c0_5, %c0_6] : memref<1x96xf32, #tpu.memory_space<vmem>>, vector<1x96xf32>
    %13 = vector.broadcast %12 : vector<1x96xf32> to vector<1024x96xf32>
    %14 = arith.mulf %11, %13 : vector<1024x96xf32>
    %c0_7 = arith.constant 0 : index
    %c0_8 = arith.constant 0 : index
    %15 = vector.load %arg3[%c0_7, %c0_8] : memref<1024x96xf32, #tpu.memory_space<vmem>>, vector<1024x96xf32>
    tpu.vector_store %arg3[%c0_7, %c0_8], %14 {strides = array<i32>} : memref<1024x96xf32, #tpu.memory_space<vmem>>, vector<1024x96xf32>,
    return
  }
  func.func @transform_0(%arg0: i32) -> (i32, i32) {
    %c0_i32 = arith.constant 0 : i32
    %c0_i32_0 = arith.constant 0 : i32
    return %arg0, %c0_i32 : i32, i32
  }
  func.func @transform_1(%arg0: i32) -> (i32, i32) {
    %c0_i32 = arith.constant 0 : i32
    %c0_i32_0 = arith.constant 0 : i32
    %c0_i32_1 = arith.constant 0 : i32
    return %c0_i32, %c0_i32_0 : i32, i32
  }
  func.func @transform_2(%arg0: i32) -> (i32, i32) {
    %c0_i32 = arith.constant 0 : i32
    %c0_i32_0 = arith.constant 0 : i32
    return %arg0, %c0_i32 : i32, i32
  }
}

</mosaic_0001>

<llo_original>
// kernel: tpu_custom_call.1
$region0: #{tpu_custom_call.1}
  #allocation0 [shape = 'u32[]', space=smem, size = 0x4, offset = 0x4, fixed_abs, tag = 'smem constant byte address 0x4 - core index']
  #allocation1 [shape = 'u32[144,128]{1,0:T(1,128)}', space=vmem, size = 0x12000, scoped, tag = 'internal scratch']
  %s0 = inlined_call_operand.vmem [shape: f32[1024,96], index: 0, kind: input, shape index: {}]
  %s1 = inlined_call_operand.vmem [shape: f32[1,96], index: 1, kind: input, shape index: {}]
  %s2 = inlined_call_operand.vmem [shape: f32[1024,96], index: 2, kind: output, shape index: {}]
  %s3 = sld [smem:[#allocation0]]
  $region18: #{tpu_custom_call.1} parent=0
    _
  %s5 = ssub.s32 1, %s3
  %s6 = scalar_select 0, %s5, %s3
  // Predicated region
  $region2: #{tpu_custom_call.1} parent=0 // pred_check
    _
  $region3: #{tpu_custom_call.1} parent=0 // pred_check_branch
    %8 = sbr.rel (0) target = $region5
  $region4: #{tpu_custom_call.1} parent=0 // pred_region
    _
  $region5: #{tpu_custom_call.1} parent=0 // pred_fallthru
    _
  // Predicated region
  $region6: #{tpu_custom_call.1} parent=0 // pred_check
    _
  $region7: #{tpu_custom_call.1} parent=0 // pred_check_branch
    %10 = sbr.rel (0) target = $region9
  $region8: #{tpu_custom_call.1} parent=0 // pred_region
    _
  $region9: #{tpu_custom_call.1} parent=0 // pred_fallthru
    _
  %v11 = vld [vmem:[%s0] sm:$0xff]
  %v12 = vld [vmem:[%s0 + $0x8] sm:$0xff]
  %v13 = vld [vmem:[%s0 + $0x10] sm:$0xff]
  %v14 = vld [vmem:[%s0 + $0x18] sm:$0xff]
  %v15 = vld [vmem:[%s0 + $0x20] sm:$0xff]
  %v16 = vld [vmem:[%s0 + $0x28] sm:$0xff]
  %v17 = vld [vmem:[%s0 + $0x30] sm:$0xff]
  %v18 = vld [vmem:[%s0 + $0x38] sm:$0xff]
  %v19 = vld [vmem:[%s0 + $0x40] sm:$0xff]
  %v20 = vld [vmem:[%s0 + $0x48] sm:$0xff]
  %v21 = vld [vmem:[%s0 + $0x50] sm:$0xff]
  %v22 = vld [vmem:[%s0 + $0x58] sm:$0xff]
  %v23 = vld [vmem:[%s0 + $0x60] sm:$0xff]
  %v24 = vld [vmem:[%s0 + $0x68] sm:$0xff]
  %v25 = vld [vmem:[%s0 + $0x70] sm:$0xff]
  %v26 = vld [vmem:[%s0 + $0x78] sm:$0xff]
  %v27 = vld [vmem:[%s0 + $0x80] sm:$0xff]
  %v28 = vld [vmem:[%s0 + $0x88] sm:$0xff]
  %v29 = vld [vmem:[%s0 + $0x90] sm:$0xff]
  %v30 = vld [vmem:[%s0 + $0x98] sm:$0xff]
  %v31 = vld [vmem:[%s0 + $0xa0] sm:$0xff]
  %v32 = vld [vmem:[%s0 + $0xa8] sm:$0xff]
  %v33 = vld [vmem:[%s0 + $0xb0] sm:$0xff]
  %v34 = vld [vmem:[%s0 + $0xb8] sm:$0xff]
  %v35 = vld [vmem:[%s0 + $0xc0] sm:$0xff]
  %v36 = vld [vmem:[%s0 + $0xc8] sm:$0xff]
  %v37 = vld [vmem:[%s0 + $0xd0] sm:$0xff]
  %v38 = vld [vmem:[%s0 + $0xd8] sm:$0xff]
  %v39 = vld [vmem:[%s0 + $0xe0] sm:$0xff]
  %v40 = vld [vmem:[%s0 + $0xe8] sm:$0xff]
  %v41 = vld [vmem:[%s0 + $0xf0] sm:$0xff]
  %v42 = vld [vmem:[%s0 + $0xf8] sm:$0xff]
  %v43 = vld [vmem:[%s0 + $0x100] sm:$0xff]
  %v44 = vld [vmem:[%s0 + $0x108] sm:$0xff]
  %v45 = vld [vmem:[%s0 + $0x110] sm:$0xff]
  %v46 = vld [vmem:[%s0 + $0x118] sm:$0xff]
  %v47 = vld [vmem:[%s0 + $0x120] sm:$0xff]
  %v48 = vld [vmem:[%s0 + $0x128] sm:$0xff]
  %v49 = vld [vmem:[%s0 + $0x130] sm:$0xff]
  %v50 = vld [vmem:[%s0 + $0x138] sm:$0xff]
  %v51 = vld [vmem:[%s0 + $0x140] sm:$0xff]
  %v52 = vld [vmem:[%s0 + $0x148] sm:$0xff]
  %v53 = vld [vmem:[%s0 + $0x150] sm:$0xff]
  %v54 = vld [vmem:[%s0 + $0x158] sm:$0xff]
  %v55 = vld [vmem:[%s0 + $0x160] sm:$0xff]
  %v56 = vld [vmem:[%s0 + $0x168] sm:$0xff]
  %v57 = vld [vmem:[%s0 + $0x170] sm:$0xff]
  %v58 = vld [vmem:[%s0 + $0x178] sm:$0xff]
  %v59 = vld [vmem:[%s0 + $0x180] sm:$0xff]
  %v60 = vld [vmem:[%s0 + $0x188] sm:$0xff]
  %v61 = vld [vmem:[%s0 + $0x190] sm:$0xff]
  %v62 = vld [vmem:[%s0 + $0x198] sm:$0xff]
  %v63 = vld [vmem:[%s0 + $0x1a0] sm:$0xff]
  %v64 = vld [vmem:[%s0 + $0x1a8] sm:$0xff]
  %v65 = vld [vmem:[%s0 + $0x1b0] sm:$0xff]
  %v66 = vld [vmem:[%s0 + $0x1b8] sm:$0xff]
  %v67 = vld [vmem:[%s0 + $0x1c0] sm:$0xff]
  %v68 = vld [vmem:[%s0 + $0x1c8] sm:$0xff]
  %v69 = vld [vmem:[%s0 + $0x1d0] sm:$0xff]
  %v70 = vld [vmem:[%s0 + $0x1d8] sm:$0xff]
  %v71 = vld [vmem:[%s0 + $0x1e0] sm:$0xff]
  %v72 = vld [vmem:[%s0 + $0x1e8] sm:$0xff]
  %v73 = vld [vmem:[%s0 + $0x1f0] sm:$0xff]
  %v74 = vld [vmem:[%s0 + $0x1f8] sm:$0xff]
  %v75 = vld [vmem:[%s0 + $0x200] sm:$0xff]
  %v76 = vld [vmem:[%s0 + $0x208] sm:$0xff]
  %v77 = vld [vmem:[%s0 + $0x210] sm:$0xff]
  %v78 = vld [vmem:[%s0 + $0x218] sm:$0xff]
  %v79 = vld [vmem:[%s0 + $0x220] sm:$0xff]
  %v80 = vld [vmem:[%s0 + $0x228] sm:$0xff]
  %v81 = vld [vmem:[%s0 + $0x230] sm:$0xff]
  %v82 = vld [vmem:[%s0 + $0x238] sm:$0xff]
  %v83 = vld [vmem:[%s0 + $0x240] sm:$0xff]
  %v84 = vld [vmem:[%s0 + $0x248] sm:$0xff]
  %v85 = vld [vmem:[%s0 + $0x250] sm:$0xff]
  %v86 = vld [vmem:[%s0 + $0x258] sm:$0xff]
  %v87 = vld [vmem:[%s0 + $0x260] sm:$0xff]
  %v88 = vld [vmem:[%s0 + $0x268] sm:$0xff]
  %v89 = vld [vmem:[%s0 + $0x270] sm:$0xff]
  %v90 = vld [vmem:[%s0 + $0x278] sm:$0xff]
  %v91 = vld [vmem:[%s0 + $0x280] sm:$0xff]
  %v92 = vld [vmem:[%s0 + $0x288] sm:$0xff]
  %v93 = vld [vmem:[%s0 + $0x290] sm:$0xff]
  %v94 = vld [vmem:[%s0 + $0x298] sm:$0xff]
  %v95 = vld [vmem:[%s0 + $0x2a0] sm:$0xff]
  %v96 = vld [vmem:[%s0 + $0x2a8] sm:$0xff]
  %v97 = vld [vmem:[%s0 + $0x2b0] sm:$0xff]
  %v98 = vld [vmem:[%s0 + $0x2b8] sm:$0xff]
  %v99 = vld [vmem:[%s0 + $0x2c0] sm:$0xff]
  %v100 = vld [vmem:[%s0 + $0x2c8] sm:$0xff]
  %v101 = vld [vmem:[%s0 + $0x2d0] sm:$0xff]
  %v102 = vld [vmem:[%s0 + $0x2d8] sm:$0xff]
  %v103 = vld [vmem:[%s0 + $0x2e0] sm:$0xff]
  %v104 = vld [vmem:[%s0 + $0x2e8] sm:$0xff]
  %v105 = vld [vmem:[%s0 + $0x2f0] sm:$0xff]
  %v106 = vld [vmem:[%s0 + $0x2f8] sm:$0xff]
  %v107 = vld [vmem:[%s0 + $0x300] sm:$0xff]
  %v108 = vld [vmem:[%s0 + $0x308] sm:$0xff]
  %v109 = vld [vmem:[%s0 + $0x310] sm:$0xff]
  %v110 = vld [vmem:[%s0 + $0x318] sm:$0xff]
  %v111 = vld [vmem:[%s0 + $0x320] sm:$0xff]
  %v112 = vld [vmem:[%s0 + $0x328] sm:$0xff]
  %v113 = vld [vmem:[%s0 + $0x330] sm:$0xff]
  %v114 = vld [vmem:[%s0 + $0x338] sm:$0xff]
  %v115 = vld [vmem:[%s0 + $0x340] sm:$0xff]
  %v116 = vld [vmem:[%s0 + $0x348] sm:$0xff]
  %v117 = vld [vmem:[%s0 + $0x350] sm:$0xff]
  %v118 = vld [vmem:[%s0 + $0x358] sm:$0xff]
  %v119 = vld [vmem:[%s0 + $0x360] sm:$0xff]
  %v120 = vld [vmem:[%s0 + $0x368] sm:$0xff]
  %v121 = vld [vmem:[%s0 + $0x370] sm:$0xff]
  %v122 = vld [vmem:[%s0 + $0x378] sm:$0xff]
  %v123 = vld [vmem:[%s0 + $0x380] sm:$0xff]
  %v124 = vld [vmem:[%s0 + $0x388] sm:$0xff]
  %v125 = vld [vmem:[%s0 + $0x390] sm:$0xff]
  %v126 = vld [vmem:[%s0 + $0x398] sm:$0xff]
  %v127 = vld [vmem:[%s0 + $0x3a0] sm:$0xff]
  %v128 = vld [vmem:[%s0 + $0x3a8] sm:$0xff]
  %v129 = vld [vmem:[%s0 + $0x3b0] sm:$0xff]
  %v130 = vld [vmem:[%s0 + $0x3b8] sm:$0xff]
  %v131 = vld [vmem:[%s0 + $0x3c0] sm:$0xff]
  %v132 = vld [vmem:[%s0 + $0x3c8] sm:$0xff]
  %v133 = vld [vmem:[%s0 + $0x3d0] sm:$0xff]
  %v134 = vld [vmem:[%s0 + $0x3d8] sm:$0xff]
  %v135 = vld [vmem:[%s0 + $0x3e0] sm:$0xff]
  %v136 = vld [vmem:[%s0 + $0x3e8] sm:$0xff]
  %v137 = vld [vmem:[%s0 + $0x3f0] sm:$0xff]
  %v138 = vld [vmem:[%s0 + $0x3f8] sm:$0xff]
  %v139 = vmul.f32 %v11, %v11
  %v140 = vmul.f32 %v12, %v12
  %v141 = vmul.f32 %v13, %v13
  %v142 = vmul.f32 %v14, %v14
  %v143 = vmul.f32 %v15, %v15
  %v144 = vmul.f32 %v16, %v16
  %v145 = vmul.f32 %v17, %v17
  %v146 = vmul.f32 %v18, %v18
  %v147 = vmul.f32 %v19, %v19
  %v148 = vmul.f32 %v20, %v20
  %v149 = vmul.f32 %v21, %v21
  %v150 = vmul.f32 %v22, %v22
  %v151 = vmul.f32 %v23, %v23
  %v152 = vmul.f32 %v24, %v24
  %v153 = vmul.f32 %v25, %v25
  %v154 = vmul.f32 %v26, %v26
  %v155 = vmul.f32 %v27, %v27
  %v156 = vmul.f32 %v28, %v28
  %v157 = vmul.f32 %v29, %v29
  %v158 = vmul.f32 %v30, %v30
  %v159 = vmul.f32 %v31, %v31
  %v160 = vmul.f32 %v32, %v32
  %v161 = vmul.f32 %v33, %v33
  %v162 = vmul.f32 %v34, %v34
  %v163 = vmul.f32 %v35, %v35
  %v164 = vmul.f32 %v36, %v36
  %v165 = vmul.f32 %v37, %v37
  %v166 = vmul.f32 %v38, %v38
  %v167 = vmul.f32 %v39, %v39
  %v168 = vmul.f32 %v40, %v40
  %v169 = vmul.f32 %v41, %v41
  %v170 = vmul.f32 %v42, %v42
  %v171 = vmul.f32 %v43, %v43
  %v172 = vmul.f32 %v44, %v44
  %v173 = vmul.f32 %v45, %v45
  %v174 = vmul.f32 %v46, %v46
  %v175 = vmul.f32 %v47, %v47
  %v176 = vmul.f32 %v48, %v48
  %v177 = vmul.f32 %v49, %v49
  %v178 = vmul.f32 %v50, %v50
  %v179 = vmul.f32 %v51, %v51
  %v180 = vmul.f32 %v52, %v52
  %v181 = vmul.f32 %v53, %v53
  %v182 = vmul.f32 %v54, %v54
  %v183 = vmul.f32 %v55, %v55
  %v184 = vmul.f32 %v56, %v56
  %v185 = vmul.f32 %v57, %v57
  %v186 = vmul.f32 %v58, %v58
  %v187 = vmul.f32 %v59, %v59
  %v188 = vmul.f32 %v60, %v60
  %v189 = vmul.f32 %v61, %v61
  %v190 = vmul.f32 %v62, %v62
  %v191 = vmul.f32 %v63, %v63
  %v192 = vmul.f32 %v64, %v64
  %v193 = vmul.f32 %v65, %v65
  %v194 = vmul.f32 %v66, %v66
  %v195 = vmul.f32 %v67, %v67
  %v196 = vmul.f32 %v68, %v68
  %v197 = vmul.f32 %v69, %v69
  %v198 = vmul.f32 %v70, %v70
  %v199 = vmul.f32 %v71, %v71
  %v200 = vmul.f32 %v72, %v72
  %v201 = vmul.f32 %v73, %v73
  %v202 = vmul.f32 %v74, %v74
  %v203 = vmul.f32 %v75, %v75
  %v204 = vmul.f32 %v76, %v76
  %v205 = vmul.f32 %v77, %v77
  %v206 = vmul.f32 %v78, %v78
  %v207 = vmul.f32 %v79, %v79
  %v208 = vmul.f32 %v80, %v80
  %v209 = vmul.f32 %v81, %v81
  %v210 = vmul.f32 %v82, %v82
  %v211 = vmul.f32 %v83, %v83
  %v212 = vmul.f32 %v84, %v84
  %v213 = vmul.f32 %v85, %v85
  %v214 = vmul.f32 %v86, %v86
  %v215 = vmul.f32 %v87, %v87
  %v216 = vmul.f32 %v88, %v88
  %v217 = vmul.f32 %v89, %v89
  %v218 = vmul.f32 %v90, %v90
  %v219 = vmul.f32 %v91, %v91
  %v220 = vmul.f32 %v92, %v92
  %v221 = vmul.f32 %v93, %v93
  %v222 = vmul.f32 %v94, %v94
  %v223 = vmul.f32 %v95, %v95
  %v224 = vmul.f32 %v96, %v96
  %v225 = vmul.f32 %v97, %v97
  %v226 = vmul.f32 %v98, %v98
  %v227 = vmul.f32 %v99, %v99
  %v228 = vmul.f32 %v100, %v100
  %v229 = vmul.f32 %v101, %v101
  %v230 = vmul.f32 %v102, %v102
  %v231 = vmul.f32 %v103, %v103
  %v232 = vmul.f32 %v104, %v104
  %v233 = vmul.f32 %v105, %v105
  %v234 = vmul.f32 %v106, %v106
  %v235 = vmul.f32 %v107, %v107
  %v236 = vmul.f32 %v108, %v108
  %v237 = vmul.f32 %v109, %v109
  %v238 = vmul.f32 %v110, %v110
  %v239 = vmul.f32 %v111, %v111
  %v240 = vmul.f32 %v112, %v112
  %v241 = vmul.f32 %v113, %v113
  %v242 = vmul.f32 %v114, %v114
  %v243 = vmul.f32 %v115, %v115
  %v244 = vmul.f32 %v116, %v116
  %v245 = vmul.f32 %v117, %v117
  %v246 = vmul.f32 %v118, %v118
  %v247 = vmul.f32 %v119, %v119
  %v248 = vmul.f32 %v120, %v120
  %v249 = vmul.f32 %v121, %v121
  %v250 = vmul.f32 %v122, %v122
  %v251 = vmul.f32 %v123, %v123
  %v252 = vmul.f32 %v124, %v124
  %v253 = vmul.f32 %v125, %v125
  %v254 = vmul.f32 %v126, %v126
  %v255 = vmul.f32 %v127, %v127
  %v256 = vmul.f32 %v128, %v128
  %v257 = vmul.f32 %v129, %v129
  %v258 = vmul.f32 %v130, %v130
  %v259 = vmul.f32 %v131, %v131
  %v260 = vmul.f32 %v132, %v132
  %v261 = vmul.f32 %v133, %v133
  %v262 = vmul.f32 %v134, %v134
  %v263 = vmul.f32 %v135, %v135
  %v264 = vmul.f32 %v136, %v136
  %v265 = vmul.f32 %v137, %v137
  %v266 = vmul.f32 %v138, %v138
  %vm267 = vcmask 785408
  %v268 = vsel %vm267, %v139, 0.0
  %269 = vadd.xlane.f32.xlu0 %v268
  %v270 = vpop.xlane.xlu0 %269
  %v271 = vsel %vm267, %v140, 0.0
  %272 = vadd.xlane.f32.xlu0 %v271
  %v273 = vpop.xlane.xlu0 %272
  %v274 = vsel %vm267, %v141, 0.0
  %275 = vadd.xlane.f32.xlu0 %v274
  %v276 = vpop.xlane.xlu0 %275
  %v277 = vsel %vm267, %v142, 0.0
  %278 = vadd.xlane.f32.xlu0 %v277
  %v279 = vpop.xlane.xlu0 %278
  %v280 = vsel %vm267, %v143, 0.0
  %281 = vadd.xlane.f32.xlu0 %v280
  %v282 = vpop.xlane.xlu0 %281
  %v283 = vsel %vm267, %v144, 0.0
  %284 = vadd.xlane.f32.xlu0 %v283
  %v285 = vpop.xlane.xlu0 %284
  %v286 = vsel %vm267, %v145, 0.0
  %287 = vadd.xlane.f32.xlu0 %v286
  %v288 = vpop.xlane.xlu0 %287
  %v289 = vsel %vm267, %v146, 0.0
  %290 = vadd.xlane.f32.xlu0 %v289
  %v291 = vpop.xlane.xlu0 %290
  %v292 = vsel %vm267, %v147, 0.0
  %293 = vadd.xlane.f32.xlu0 %v292
  %v294 = vpop.xlane.xlu0 %293
  %v295 = vsel %vm267, %v148, 0.0
  %296 = vadd.xlane.f32.xlu0 %v295
  %v297 = vpop.xlane.xlu0 %296
  %v298 = vsel %vm267, %v149, 0.0
  %299 = vadd.xlane.f32.xlu0 %v298
  %v300 = vpop.xlane.xlu0 %299
  %v301 = vsel %vm267, %v150, 0.0
  %302 = vadd.xlane.f32.xlu0 %v301
  %v303 = vpop.xlane.xlu0 %302
  %v304 = vsel %vm267, %v151, 0.0
  %305 = vadd.xlane.f32.xlu0 %v304
  %v306 = vpop.xlane.xlu0 %305
  %v307 = vsel %vm267, %v152, 0.0
  %308 = vadd.xlane.f32.xlu0 %v307
  %v309 = vpop.xlane.xlu0 %308
  %v310 = vsel %vm267, %v153, 0.0
  %311 = vadd.xlane.f32.xlu0 %v310
  %v312 = vpop.xlane.xlu0 %311
  %v313 = vsel %vm267, %v154, 0.0
  %314 = vadd.xlane.f32.xlu0 %v313
  %v315 = vpop.xlane.xlu0 %314
  %v316 = vsel %vm267, %v155, 0.0
  %317 = vadd.xlane.f32.xlu0 %v316
  %v318 = vpop.xlane.xlu0 %317
  %v319 = vsel %vm267, %v156, 0.0
  %320 = vadd.xlane.f32.xlu0 %v319
  %v321 = vpop.xlane.xlu0 %320
  %v322 = vsel %vm267, %v157, 0.0
  %323 = vadd.xlane.f32.xlu0 %v322
  %v324 = vpop.xlane.xlu0 %323
  %v325 = vsel %vm267, %v158, 0.0
  %326 = vadd.xlane.f32.xlu0 %v325
  %v327 = vpop.xlane.xlu0 %326
  %v328 = vsel %vm267, %v159, 0.0
  %329 = vadd.xlane.f32.xlu0 %v328
  %v330 = vpop.xlane.xlu0 %329
  %v331 = vsel %vm267, %v160, 0.0
  %332 = vadd.xlane.f32.xlu0 %v331
  %v333 = vpop.xlane.xlu0 %332
  %v334 = vsel %vm267, %v161, 0.0
  %335 = vadd.xlane.f32.xlu0 %v334
  %v336 = vpop.xlane.xlu0 %335
  %v337 = vsel %vm267, %v162, 0.0
  %338 = vadd.xlane.f32.xlu0 %v337
  %v339 = vpop.xlane.xlu0 %338
  %v340 = vsel %vm267, %v163, 0.0
  %341 = vadd.xlane.f32.xlu0 %v340
  %v342 = vpop.xlane.xlu0 %341
  %v343 = vsel %vm267, %v164, 0.0
  %344 = vadd.xlane.f32.xlu0 %v343
  %v345 = vpop.xlane.xlu0 %344
  %v346 = vsel %vm267, %v165, 0.0
  %347 = vadd.xlane.f32.xlu0 %v346
  %v348 = vpop.xlane.xlu0 %347
  %v349 = vsel %vm267, %v166, 0.0
  %350 = vadd.xlane.f32.xlu0 %v349
  %v351 = vpop.xlane.xlu0 %350
  %v352 = vsel %vm267, %v167, 0.0
  %353 = vadd.xlane.f32.xlu0 %v352
  %v354 = vpop.xlane.xlu0 %353
  %v355 = vsel %vm267, %v168, 0.0
  %356 = vadd.xlane.f32.xlu0 %v355
  %v357 = vpop.xlane.xlu0 %356
  %v358 = vsel %vm267, %v169, 0.0
  %359 = vadd.xlane.f32.xlu0 %v358
  %v360 = vpop.xlane.xlu0 %359
  %v361 = vsel %vm267, %v170, 0.0
  %362 = vadd.xlane.f32.xlu0 %v361
  %v363 = vpop.xlane.xlu0 %362
  %v364 = vsel %vm267, %v171, 0.0
  %365 = vadd.xlane.f32.xlu0 %v364
  %v366 = vpop.xlane.xlu0 %365
  %v367 = vsel %vm267, %v172, 0.0
  %368 = vadd.xlane.f32.xlu0 %v367
  %v369 = vpop.xlane.xlu0 %368
  %v370 = vsel %vm267, %v173, 0.0
  %371 = vadd.xlane.f32.xlu0 %v370
  %v372 = vpop.xlane.xlu0 %371
  %v373 = vsel %vm267, %v174, 0.0
  %374 = vadd.xlane.f32.xlu0 %v373
  %v375 = vpop.xlane.xlu0 %374
  %v376 = vsel %vm267, %v175, 0.0
  %377 = vadd.xlane.f32.xlu0 %v376
  %v378 = vpop.xlane.xlu0 %377
  %v379 = vsel %vm267, %v176, 0.0
  %380 = vadd.xlane.f32.xlu0 %v379
  %v381 = vpop.xlane.xlu0 %380
  %v382 = vsel %vm267, %v177, 0.0
  %383 = vadd.xlane.f32.xlu0 %v382
  %v384 = vpop.xlane.xlu0 %383
  %v385 = vsel %vm267, %v178, 0.0
  %386 = vadd.xlane.f32.xlu0 %v385
  %v387 = vpop.xlane.xlu0 %386
  %v388 = vsel %vm267, %v179, 0.0
  %389 = vadd.xlane.f32.xlu0 %v388
  %v390 = vpop.xlane.xlu0 %389
  %v391 = vsel %vm267, %v180, 0.0
  %392 = vadd.xlane.f32.xlu0 %v391
  %v393 = vpop.xlane.xlu0 %392
  %v394 = vsel %vm267, %v181, 0.0
  %395 = vadd.xlane.f32.xlu0 %v394
  %v396 = vpop.xlane.xlu0 %395
  %v397 = vsel %vm267, %v182, 0.0
  %398 = vadd.xlane.f32.xlu0 %v397
  %v399 = vpop.xlane.xlu0 %398
  %v400 = vsel %vm267, %v183, 0.0
  %401 = vadd.xlane.f32.xlu0 %v400
  %v402 = vpop.xlane.xlu0 %401
  %v403 = vsel %vm267, %v184, 0.0
  %404 = vadd.xlane.f32.xlu0 %v403
  %v405 = vpop.xlane.xlu0 %404
  %v406 = vsel %vm267, %v185, 0.0
  %407 = vadd.xlane.f32.xlu0 %v406
  %v408 = vpop.xlane.xlu0 %407
  %v409 = vsel %vm267, %v186, 0.0
  %410 = vadd.xlane.f32.xlu0 %v409
  %v411 = vpop.xlane.xlu0 %410
  %v412 = vsel %vm267, %v187, 0.0
  %413 = vadd.xlane.f32.xlu0 %v412
  %v414 = vpop.xlane.xlu0 %413
  %v415 = vsel %vm267, %v188, 0.0
  %416 = vadd.xlane.f32.xlu0 %v415
  %v417 = vpop.xlane.xlu0 %416
  %v418 = vsel %vm267, %v189, 0.0
  %419 = vadd.xlane.f32.xlu0 %v418
  %v420 = vpop.xlane.xlu0 %419
  %v421 = vsel %vm267, %v190, 0.0
  %422 = vadd.xlane.f32.xlu0 %v421
  %v423 = vpop.xlane.xlu0 %422
  %v424 = vsel %vm267, %v191, 0.0
  %425 = vadd.xlane.f32.xlu0 %v424
  %v426 = vpop.xlane.xlu0 %425
  %v427 = vsel %vm267, %v192, 0.0
  %428 = vadd.xlane.f32.xlu0 %v427
  %v429 = vpop.xlane.xlu0 %428
  %v430 = vsel %vm267, %v193, 0.0
  %431 = vadd.xlane.f32.xlu0 %v430
  %v432 = vpop.xlane.xlu0 %431
  %v433 = vsel %vm267, %v194, 0.0
  %434 = vadd.xlane.f32.xlu0 %v433
  %v435 = vpop.xlane.xlu0 %434
  %v436 = vsel %vm267, %v195, 0.0
  %437 = vadd.xlane.f32.xlu0 %v436
  %v438 = vpop.xlane.xlu0 %437
  %v439 = vsel %vm267, %v196, 0.0
  %440 = vadd.xlane.f32.xlu0 %v439
  %v441 = vpop.xlane.xlu0 %440
  %v442 = vsel %vm267, %v197, 0.0
  %443 = vadd.xlane.f32.xlu0 %v442
  %v444 = vpop.xlane.xlu0 %443
  %v445 = vsel %vm267, %v198, 0.0
  %446 = vadd.xlane.f32.xlu0 %v445
  %v447 = vpop.xlane.xlu0 %446
  %v448 = vsel %vm267, %v199, 0.0
  %449 = vadd.xlane.f32.xlu0 %v448
  %v450 = vpop.xlane.xlu0 %449
  %v451 = vsel %vm267, %v200, 0.0
  %452 = vadd.xlane.f32.xlu0 %v451
  %v453 = vpop.xlane.xlu0 %452
  %v454 = vsel %vm267, %v201, 0.0
  %455 = vadd.xlane.f32.xlu0 %v454
  %v456 = vpop.xlane.xlu0 %455
  %v457 = vsel %vm267, %v202, 0.0
  %458 = vadd.xlane.f32.xlu0 %v457
  %v459 = vpop.xlane.xlu0 %458
  %v460 = vsel %vm267, %v203, 0.0
  %461 = vadd.xlane.f32.xlu0 %v460
  %v462 = vpop.xlane.xlu0 %461
  %v463 = vsel %vm267, %v204, 0.0
  %464 = vadd.xlane.f32.xlu0 %v463
  %v465 = vpop.xlane.xlu0 %464
  %v466 = vsel %vm267, %v205, 0.0
  %467 = vadd.xlane.f32.xlu0 %v466
  %v468 = vpop.xlane.xlu0 %467
  %v469 = vsel %vm267, %v206, 0.0
  %470 = vadd.xlane.f32.xlu0 %v469
  %v471 = vpop.xlane.xlu0 %470
  %v472 = vsel %vm267, %v207, 0.0
  %473 = vadd.xlane.f32.xlu0 %v472
  %v474 = vpop.xlane.xlu0 %473
  %v475 = vsel %vm267, %v208, 0.0
  %476 = vadd.xlane.f32.xlu0 %v475
  %v477 = vpop.xlane.xlu0 %476
  %v478 = vsel %vm267, %v209, 0.0
  %479 = vadd.xlane.f32.xlu0 %v478
  %v480 = vpop.xlane.xlu0 %479
  %v481 = vsel %vm267, %v210, 0.0
  %482 = vadd.xlane.f32.xlu0 %v481
  %v483 = vpop.xlane.xlu0 %482
  %v484 = vsel %vm267, %v211, 0.0
  %485 = vadd.xlane.f32.xlu0 %v484
  %v486 = vpop.xlane.xlu0 %485
  %v487 = vsel %vm267, %v212, 0.0
  %488 = vadd.xlane.f32.xlu0 %v487
  %v489 = vpop.xlane.xlu0 %488
  %v490 = vsel %vm267, %v213, 0.0
  %491 = vadd.xlane.f32.xlu0 %v490
  %v492 = vpop.xlane.xlu0 %491
  %v493 = vsel %vm267, %v214, 0.0
  %494 = vadd.xlane.f32.xlu0 %v493
  %v495 = vpop.xlane.xlu0 %494
  %v496 = vsel %vm267, %v215, 0.0
  %497 = vadd.xlane.f32.xlu0 %v496
  %v498 = vpop.xlane.xlu0 %497
  %v499 = vsel %vm267, %v216, 0.0
  %500 = vadd.xlane.f32.xlu0 %v499
  %v501 = vpop.xlane.xlu0 %500
  %v502 = vsel %vm267, %v217, 0.0
  %503 = vadd.xlane.f32.xlu0 %v502
  %v504 = vpop.xlane.xlu0 %503
  %v505 = vsel %vm267, %v218, 0.0
  %506 = vadd.xlane.f32.xlu0 %v505
  %v507 = vpop.xlane.xlu0 %506
  %v508 = vsel %vm267, %v219, 0.0
  %509 = vadd.xlane.f32.xlu0 %v508
  %v510 = vpop.xlane.xlu0 %509
  %v511 = vsel %vm267, %v220, 0.0
  %512 = vadd.xlane.f32.xlu0 %v511
  %v513 = vpop.xlane.xlu0 %512
  %v514 = vsel %vm267, %v221, 0.0
  %515 = vadd.xlane.f32.xlu0 %v514
  %v516 = vpop.xlane.xlu0 %515
  %v517 = vsel %vm267, %v222, 0.0
  %518 = vadd.xlane.f32.xlu0 %v517
  %v519 = vpop.xlane.xlu0 %518
  %v520 = vsel %vm267, %v223, 0.0
  %521 = vadd.xlane.f32.xlu0 %v520
  %v522 = vpop.xlane.xlu0 %521
  %v523 = vsel %vm267, %v224, 0.0
  %524 = vadd.xlane.f32.xlu0 %v523
  %v525 = vpop.xlane.xlu0 %524
  %v526 = vsel %vm267, %v225, 0.0
  %527 = vadd.xlane.f32.xlu0 %v526
  %v528 = vpop.xlane.xlu0 %527
  %v529 = vsel %vm267, %v226, 0.0
  %530 = vadd.xlane.f32.xlu0 %v529
  %v531 = vpop.xlane.xlu0 %530
  %v532 = vsel %vm267, %v227, 0.0
  %533 = vadd.xlane.f32.xlu0 %v532
  %v534 = vpop.xlane.xlu0 %533
  %v535 = vsel %vm267, %v228, 0.0
  %536 = vadd.xlane.f32.xlu0 %v535
  %v537 = vpop.xlane.xlu0 %536
  %v538 = vsel %vm267, %v229, 0.0
  %539 = vadd.xlane.f32.xlu0 %v538
  %v540 = vpop.xlane.xlu0 %539
  %v541 = vsel %vm267, %v230, 0.0
  %542 = vadd.xlane.f32.xlu0 %v541
  %v543 = vpop.xlane.xlu0 %542
  %v544 = vsel %vm267, %v231, 0.0
  %545 = vadd.xlane.f32.xlu0 %v544
  %v546 = vpop.xlane.xlu0 %545
  %v547 = vsel %vm267, %v232, 0.0
  %548 = vadd.xlane.f32.xlu0 %v547
  %v549 = vpop.xlane.xlu0 %548
  %v550 = vsel %vm267, %v233, 0.0
  %551 = vadd.xlane.f32.xlu0 %v550
  %v552 = vpop.xlane.xlu0 %551
  %v553 = vsel %vm267, %v234, 0.0
  %554 = vadd.xlane.f32.xlu0 %v553
  %v555 = vpop.xlane.xlu0 %554
  %v556 = vsel %vm267, %v235, 0.0
  %557 = vadd.xlane.f32.xlu0 %v556
  %v558 = vpop.xlane.xlu0 %557
  %v559 = vsel %vm267, %v236, 0.0
  %560 = vadd.xlane.f32.xlu0 %v559
  %v561 = vpop.xlane.xlu0 %560
  %v562 = vsel %vm267, %v237, 0.0
  %563 = vadd.xlane.f32.xlu0 %v562
  %v564 = vpop.xlane.xlu0 %563
  %v565 = vsel %vm267, %v238, 0.0
  %566 = vadd.xlane.f32.xlu0 %v565
  %v567 = vpop.xlane.xlu0 %566
  %v568 = vsel %vm267, %v239, 0.0
  %569 = vadd.xlane.f32.xlu0 %v568
  %v570 = vpop.xlane.xlu0 %569
  %v571 = vsel %vm267, %v240, 0.0
  %572 = vadd.xlane.f32.xlu0 %v571
  %v573 = vpop.xlane.xlu0 %572
  %v574 = vsel %vm267, %v241, 0.0
  %575 = vadd.xlane.f32.xlu0 %v574
  %v576 = vpop.xlane.xlu0 %575
  %v577 = vsel %vm267, %v242, 0.0
  %578 = vadd.xlane.f32.xlu0 %v577
  %v579 = vpop.xlane.xlu0 %578
  %v580 = vsel %vm267, %v243, 0.0
  %581 = vadd.xlane.f32.xlu0 %v580
  %v582 = vpop.xlane.xlu0 %581
  %v583 = vsel %vm267, %v244, 0.0
  %584 = vadd.xlane.f32.xlu0 %v583
  %v585 = vpop.xlane.xlu0 %584
  %v586 = vsel %vm267, %v245, 0.0
  %587 = vadd.xlane.f32.xlu0 %v586
  %v588 = vpop.xlane.xlu0 %587
  %v589 = vsel %vm267, %v246, 0.0
  %590 = vadd.xlane.f32.xlu0 %v589
  %v591 = vpop.xlane.xlu0 %590
  %v592 = vsel %vm267, %v247, 0.0
  %593 = vadd.xlane.f32.xlu0 %v592
  %v594 = vpop.xlane.xlu0 %593
  %v595 = vsel %vm267, %v248, 0.0
  %596 = vadd.xlane.f32.xlu0 %v595
  %v597 = vpop.xlane.xlu0 %596
  %v598 = vsel %vm267, %v249, 0.0
  %599 = vadd.xlane.f32.xlu0 %v598
  %v600 = vpop.xlane.xlu0 %599
  %v601 = vsel %vm267, %v250, 0.0
  %602 = vadd.xlane.f32.xlu0 %v601
  %v603 = vpop.xlane.xlu0 %602
  %v604 = vsel %vm267, %v251, 0.0
  %605 = vadd.xlane.f32.xlu0 %v604
  %v606 = vpop.xlane.xlu0 %605
  %v607 = vsel %vm267, %v252, 0.0
  %608 = vadd.xlane.f32.xlu0 %v607
  %v609 = vpop.xlane.xlu0 %608
  %v610 = vsel %vm267, %v253, 0.0
  %611 = vadd.xlane.f32.xlu0 %v610
  %v612 = vpop.xlane.xlu0 %611
  %v613 = vsel %vm267, %v254, 0.0
  %614 = vadd.xlane.f32.xlu0 %v613
  %v615 = vpop.xlane.xlu0 %614
  %v616 = vsel %vm267, %v255, 0.0
  %617 = vadd.xlane.f32.xlu0 %v616
  %v618 = vpop.xlane.xlu0 %617
  %v619 = vsel %vm267, %v256, 0.0
  %620 = vadd.xlane.f32.xlu0 %v619
  %v621 = vpop.xlane.xlu0 %620
  %v622 = vsel %vm267, %v257, 0.0
  %623 = vadd.xlane.f32.xlu0 %v622
  %v624 = vpop.xlane.xlu0 %623
  %v625 = vsel %vm267, %v258, 0.0
  %626 = vadd.xlane.f32.xlu0 %v625
  %v627 = vpop.xlane.xlu0 %626
  %v628 = vsel %vm267, %v259, 0.0
  %629 = vadd.xlane.f32.xlu0 %v628
  %v630 = vpop.xlane.xlu0 %629
  %v631 = vsel %vm267, %v260, 0.0
  %632 = vadd.xlane.f32.xlu0 %v631
  %v633 = vpop.xlane.xlu0 %632
  %v634 = vsel %vm267, %v261, 0.0
  %635 = vadd.xlane.f32.xlu0 %v634
  %v636 = vpop.xlane.xlu0 %635
  %v637 = vsel %vm267, %v262, 0.0
  %638 = vadd.xlane.f32.xlu0 %v637
  %v639 = vpop.xlane.xlu0 %638
  %v640 = vsel %vm267, %v263, 0.0
  %641 = vadd.xlane.f32.xlu0 %v640
  %v642 = vpop.xlane.xlu0 %641
  %v643 = vsel %vm267, %v264, 0.0
  %644 = vadd.xlane.f32.xlu0 %v643
  %v645 = vpop.xlane.xlu0 %644
  %v646 = vsel %vm267, %v265, 0.0
  %647 = vadd.xlane.f32.xlu0 %v646
  %v648 = vpop.xlane.xlu0 %647
  %v649 = vsel %vm267, %v266, 0.0
  %650 = vadd.xlane.f32.xlu0 %v649
  %v651 = vpop.xlane.xlu0 %650
  %v652 = vmul.f32 %v270, 0.010416667
  %v653 = vmul.f32 %v273, 0.010416667
  %v654 = vmul.f32 %v276, 0.010416667
  %v655 = vmul.f32 %v279, 0.010416667
  %v656 = vmul.f32 %v282, 0.010416667
  %v657 = vmul.f32 %v285, 0.010416667
  %v658 = vmul.f32 %v288, 0.010416667
  %v659 = vmul.f32 %v291, 0.010416667
  %v660 = vmul.f32 %v294, 0.010416667
  %v661 = vmul.f32 %v297, 0.010416667
  %v662 = vmul.f32 %v300, 0.010416667
  %v663 = vmul.f32 %v303, 0.010416667
  %v664 = vmul.f32 %v306, 0.010416667
  %v665 = vmul.f32 %v309, 0.010416667
  %v666 = vmul.f32 %v312, 0.010416667
  %v667 = vmul.f32 %v315, 0.010416667
  %v668 = vmul.f32 %v318, 0.010416667
  %v669 = vmul.f32 %v321, 0.010416667
  %v670 = vmul.f32 %v324, 0.010416667
  %v671 = vmul.f32 %v327, 0.010416667
  %v672 = vmul.f32 %v330, 0.010416667
  %v673 = vmul.f32 %v333, 0.010416667
  %v674 = vmul.f32 %v336, 0.010416667
  %v675 = vmul.f32 %v339, 0.010416667
  %v676 = vmul.f32 %v342, 0.010416667
  %v677 = vmul.f32 %v345, 0.010416667
  %v678 = vmul.f32 %v348, 0.010416667
  %v679 = vmul.f32 %v351, 0.010416667
  %v680 = vmul.f32 %v354, 0.010416667
  %v681 = vmul.f32 %v357, 0.010416667
  %v682 = vmul.f32 %v360, 0.010416667
  %v683 = vmul.f32 %v363, 0.010416667
  %v684 = vmul.f32 %v366, 0.010416667
  %v685 = vmul.f32 %v369, 0.010416667
  %v686 = vmul.f32 %v372, 0.010416667
  %v687 = vmul.f32 %v375, 0.010416667
  %v688 = vmul.f32 %v378, 0.010416667
  %v689 = vmul.f32 %v381, 0.010416667
  %v690 = vmul.f32 %v384, 0.010416667
  %v691 = vmul.f32 %v387, 0.010416667
  %v692 = vmul.f32 %v390, 0.010416667
  %v693 = vmul.f32 %v393, 0.010416667
  %v694 = vmul.f32 %v396, 0.010416667
  %v695 = vmul.f32 %v399, 0.010416667
  %v696 = vmul.f32 %v402, 0.010416667
  %v697 = vmul.f32 %v405, 0.010416667
  %v698 = vmul.f32 %v408, 0.010416667
  %v699 = vmul.f32 %v411, 0.010416667
  %v700 = vmul.f32 %v414, 0.010416667
  %v701 = vmul.f32 %v417, 0.010416667
  %v702 = vmul.f32 %v420, 0.010416667
  %v703 = vmul.f32 %v423, 0.010416667
  %v704 = vmul.f32 %v426, 0.010416667
  %v705 = vmul.f32 %v429, 0.010416667
  %v706 = vmul.f32 %v432, 0.010416667
  %v707 = vmul.f32 %v435, 0.010416667
  %v708 = vmul.f32 %v438, 0.010416667
  %v709 = vmul.f32 %v441, 0.010416667
  %v710 = vmul.f32 %v444, 0.010416667
  %v711 = vmul.f32 %v447, 0.010416667
  %v712 = vmul.f32 %v450, 0.010416667
  %v713 = vmul.f32 %v453, 0.010416667
  %v714 = vmul.f32 %v456, 0.010416667
  %v715 = vmul.f32 %v459, 0.010416667
  %v716 = vmul.f32 %v462, 0.010416667
  %v717 = vmul.f32 %v465, 0.010416667
  %v718 = vmul.f32 %v468, 0.010416667
  %v719 = vmul.f32 %v471, 0.010416667
  %v720 = vmul.f32 %v474, 0.010416667
  %v721 = vmul.f32 %v477, 0.010416667
  %v722 = vmul.f32 %v480, 0.010416667
  %v723 = vmul.f32 %v483, 0.010416667
  %v724 = vmul.f32 %v486, 0.010416667
  %v725 = vmul.f32 %v489, 0.010416667
  %v726 = vmul.f32 %v492, 0.010416667
  %v727 = vmul.f32 %v495, 0.010416667
  %v728 = vmul.f32 %v498, 0.010416667
  %v729 = vmul.f32 %v501, 0.010416667
  %v730 = vmul.f32 %v504, 0.010416667
  %v731 = vmul.f32 %v507, 0.010416667
  %v732 = vmul.f32 %v510, 0.010416667
  %v733 = vmul.f32 %v513, 0.010416667
  %v734 = vmul.f32 %v516, 0.010416667
  %v735 = vmul.f32 %v519, 0.010416667
  %v736 = vmul.f32 %v522, 0.010416667
  %v737 = vmul.f32 %v525, 0.010416667
  %v738 = vmul.f32 %v528, 0.010416667
  %v739 = vmul.f32 %v531, 0.010416667
  %v740 = vmul.f32 %v534, 0.010416667
  %v741 = vmul.f32 %v537, 0.010416667
  %v742 = vmul.f32 %v540, 0.010416667
  %v743 = vmul.f32 %v543, 0.010416667
  %v744 = vmul.f32 %v546, 0.010416667
  %v745 = vmul.f32 %v549, 0.010416667
  %v746 = vmul.f32 %v552, 0.010416667
  %v747 = vmul.f32 %v555, 0.010416667
  %v748 = vmul.f32 %v558, 0.010416667
  %v749 = vmul.f32 %v561, 0.010416667
  %v750 = vmul.f32 %v564, 0.010416667
  %v751 = vmul.f32 %v567, 0.010416667
  %v752 = vmul.f32 %v570, 0.010416667
  %v753 = vmul.f32 %v573, 0.010416667
  %v754 = vmul.f32 %v576, 0.010416667
  %v755 = vmul.f32 %v579, 0.010416667
  %v756 = vmul.f32 %v582, 0.010416667
  %v757 = vmul.f32 %v585, 0.010416667
  %v758 = vmul.f32 %v588, 0.010416667
  %v759 = vmul.f32 %v591, 0.010416667
  %v760 = vmul.f32 %v594, 0.010416667
  %v761 = vmul.f32 %v597, 0.010416667
  %v762 = vmul.f32 %v600, 0.010416667
  %v763 = vmul.f32 %v603, 0.010416667
  %v764 = vmul.f32 %v606, 0.010416667
  %v765 = vmul.f32 %v609, 0.010416667
  %v766 = vmul.f32 %v612, 0.010416667
  %v767 = vmul.f32 %v615, 0.010416667
  %v768 = vmul.f32 %v618, 0.010416667
  %v769 = vmul.f32 %v621, 0.010416667
  %v770 = vmul.f32 %v624, 0.010416667
  %v771 = vmul.f32 %v627, 0.010416667
  %v772 = vmul.f32 %v630, 0.010416667
  %v773 = vmul.f32 %v633, 0.010416667
  %v774 = vmul.f32 %v636, 0.010416667
  %v775 = vmul.f32 %v639, 0.010416667
  %v776 = vmul.f32 %v642, 0.010416667
  %v777 = vmul.f32 %v645, 0.010416667
  %v778 = vmul.f32 %v648, 0.010416667
  %v779 = vmul.f32 %v651, 0.010416667
  %v780 = vadd.f32 %v652, 1e-06
  %v781 = vadd.f32 %v653, 1e-06
  %v782 = vadd.f32 %v654, 1e-06
  %v783 = vadd.f32 %v655, 1e-06
  %v784 = vadd.f32 %v656, 1e-06
  %v785 = vadd.f32 %v657, 1e-06
  %v786 = vadd.f32 %v658, 1e-06
  %v787 = vadd.f32 %v659, 1e-06
  %v788 = vadd.f32 %v660, 1e-06
  %v789 = vadd.f32 %v661, 1e-06
  %v790 = vadd.f32 %v662, 1e-06
  %v791 = vadd.f32 %v663, 1e-06
  %v792 = vadd.f32 %v664, 1e-06
  %v793 = vadd.f32 %v665, 1e-06
  %v794 = vadd.f32 %v666, 1e-06
  %v795 = vadd.f32 %v667, 1e-06
  %v796 = vadd.f32 %v668, 1e-06
  %v797 = vadd.f32 %v669, 1e-06
  %v798 = vadd.f32 %v670, 1e-06
  %v799 = vadd.f32 %v671, 1e-06
  %v800 = vadd.f32 %v672, 1e-06
  %v801 = vadd.f32 %v673, 1e-06
  %v802 = vadd.f32 %v674, 1e-06
  %v803 = vadd.f32 %v675, 1e-06
  %v804 = vadd.f32 %v676, 1e-06
  %v805 = vadd.f32 %v677, 1e-06
  %v806 = vadd.f32 %v678, 1e-06
  %v807 = vadd.f32 %v679, 1e-06
  %v808 = vadd.f32 %v680, 1e-06
  %v809 = vadd.f32 %v681, 1e-06
  %v810 = vadd.f32 %v682, 1e-06
  %v811 = vadd.f32 %v683, 1e-06
  %v812 = vadd.f32 %v684, 1e-06
  %v813 = vadd.f32 %v685, 1e-06
  %v814 = vadd.f32 %v686, 1e-06
  %v815 = vadd.f32 %v687, 1e-06
  %v816 = vadd.f32 %v688, 1e-06
  %v817 = vadd.f32 %v689, 1e-06
  %v818 = vadd.f32 %v690, 1e-06
  %v819 = vadd.f32 %v691, 1e-06
  %v820 = vadd.f32 %v692, 1e-06
  %v821 = vadd.f32 %v693, 1e-06
  %v822 = vadd.f32 %v694, 1e-06
  %v823 = vadd.f32 %v695, 1e-06
  %v824 = vadd.f32 %v696, 1e-06
  %v825 = vadd.f32 %v697, 1e-06
  %v826 = vadd.f32 %v698, 1e-06
  %v827 = vadd.f32 %v699, 1e-06
  %v828 = vadd.f32 %v700, 1e-06
  %v829 = vadd.f32 %v701, 1e-06
  %v830 = vadd.f32 %v702, 1e-06
  %v831 = vadd.f32 %v703, 1e-06
  %v832 = vadd.f32 %v704, 1e-06
  %v833 = vadd.f32 %v705, 1e-06
  %v834 = vadd.f32 %v706, 1e-06
  %v835 = vadd.f32 %v707, 1e-06
  %v836 = vadd.f32 %v708, 1e-06
  %v837 = vadd.f32 %v709, 1e-06
  %v838 = vadd.f32 %v710, 1e-06
  %v839 = vadd.f32 %v711, 1e-06
  %v840 = vadd.f32 %v712, 1e-06
  %v841 = vadd.f32 %v713, 1e-06
  %v842 = vadd.f32 %v714, 1e-06
  %v843 = vadd.f32 %v715, 1e-06
  %v844 = vadd.f32 %v716, 1e-06
  %v845 = vadd.f32 %v717, 1e-06
  %v846 = vadd.f32 %v718, 1e-06
  %v847 = vadd.f32 %v719, 1e-06
  %v848 = vadd.f32 %v720, 1e-06
  %v849 = vadd.f32 %v721, 1e-06
  %v850 = vadd.f32 %v722, 1e-06
  %v851 = vadd.f32 %v723, 1e-06
  %v852 = vadd.f32 %v724, 1e-06
  %v853 = vadd.f32 %v725, 1e-06
  %v854 = vadd.f32 %v726, 1e-06
  %v855 = vadd.f32 %v727, 1e-06
  %v856 = vadd.f32 %v728, 1e-06
  %v857 = vadd.f32 %v729, 1e-06
  %v858 = vadd.f32 %v730, 1e-06
  %v859 = vadd.f32 %v731, 1e-06
  %v860 = vadd.f32 %v732, 1e-06
  %v861 = vadd.f32 %v733, 1e-06
  %v862 = vadd.f32 %v734, 1e-06
  %v863 = vadd.f32 %v735, 1e-06
  %v864 = vadd.f32 %v736, 1e-06
  %v865 = vadd.f32 %v737, 1e-06
  %v866 = vadd.f32 %v738, 1e-06
  %v867 = vadd.f32 %v739, 1e-06
  %v868 = vadd.f32 %v740, 1e-06
  %v869 = vadd.f32 %v741, 1e-06
  %v870 = vadd.f32 %v742, 1e-06
  %v871 = vadd.f32 %v743, 1e-06
  %v872 = vadd.f32 %v744, 1e-06
  %v873 = vadd.f32 %v745, 1e-06
  %v874 = vadd.f32 %v746, 1e-06
  %v875 = vadd.f32 %v747, 1e-06
  %v876 = vadd.f32 %v748, 1e-06
  %v877 = vadd.f32 %v749, 1e-06
  %v878 = vadd.f32 %v750, 1e-06
  %v879 = vadd.f32 %v751, 1e-06
  %v880 = vadd.f32 %v752, 1e-06
  %v881 = vadd.f32 %v753, 1e-06
  %v882 = vadd.f32 %v754, 1e-06
  %v883 = vadd.f32 %v755, 1e-06
  %v884 = vadd.f32 %v756, 1e-06
  %v885 = vadd.f32 %v757, 1e-06
  %v886 = vadd.f32 %v758, 1e-06
  %v887 = vadd.f32 %v759, 1e-06
  %v888 = vadd.f32 %v760, 1e-06
  %v889 = vadd.f32 %v761, 1e-06
  %v890 = vadd.f32 %v762, 1e-06
  %v891 = vadd.f32 %v763, 1e-06
  %v892 = vadd.f32 %v764, 1e-06
  %v893 = vadd.f32 %v765, 1e-06
  %v894 = vadd.f32 %v766, 1e-06
  %v895 = vadd.f32 %v767, 1e-06
  %v896 = vadd.f32 %v768, 1e-06
  %v897 = vadd.f32 %v769, 1e-06
  %v898 = vadd.f32 %v770, 1e-06
  %v899 = vadd.f32 %v771, 1e-06
  %v900 = vadd.f32 %v772, 1e-06
  %v901 = vadd.f32 %v773, 1e-06
  %v902 = vadd.f32 %v774, 1e-06
  %v903 = vadd.f32 %v775, 1e-06
  %v904 = vadd.f32 %v776, 1e-06
  %v905 = vadd.f32 %v777, 1e-06
  %v906 = vadd.f32 %v778, 1e-06
  %v907 = vadd.f32 %v779, 1e-06
  %v908 = vrsqrt.pop %v780
  %v909 = vrsqrt.pop %v781
  %v910 = vrsqrt.pop %v782
  %v911 = vrsqrt.pop %v783
  %v912 = vrsqrt.pop %v784
  %v913 = vrsqrt.pop %v785
  %v914 = vrsqrt.pop %v786
  %v915 = vrsqrt.pop %v787
  %v916 = vrsqrt.pop %v788
  %v917 = vrsqrt.pop %v789
  %v918 = vrsqrt.pop %v790
  %v919 = vrsqrt.pop %v791
  %v920 = vrsqrt.pop %v792
  %v921 = vrsqrt.pop %v793
  %v922 = vrsqrt.pop %v794
  %v923 = vrsqrt.pop %v795
  %v924 = vrsqrt.pop %v796
  %v925 = vrsqrt.pop %v797
  %v926 = vrsqrt.pop %v798
  %v927 = vrsqrt.pop %v799
  %v928 = vrsqrt.pop %v800
  %v929 = vrsqrt.pop %v801
  %v930 = vrsqrt.pop %v802
  %v931 = vrsqrt.pop %v803
  %v932 = vrsqrt.pop %v804
  %v933 = vrsqrt.pop %v805
  %v934 = vrsqrt.pop %v806
  %v935 = vrsqrt.pop %v807
  %v936 = vrsqrt.pop %v808
  %v937 = vrsqrt.pop %v809
  %v938 = vrsqrt.pop %v810
  %v939 = vrsqrt.pop %v811
  %v940 = vrsqrt.pop %v812
  %v941 = vrsqrt.pop %v813
  %v942 = vrsqrt.pop %v814
  %v943 = vrsqrt.pop %v815
  %v944 = vrsqrt.pop %v816
  %v945 = vrsqrt.pop %v817
  %v946 = vrsqrt.pop %v818
  %v947 = vrsqrt.pop %v819
  %v948 = vrsqrt.pop %v820
  %v949 = vrsqrt.pop %v821
  %v950 = vrsqrt.pop %v822
  %v951 = vrsqrt.pop %v823
  %v952 = vrsqrt.pop %v824
  %v953 = vrsqrt.pop %v825
  %v954 = vrsqrt.pop %v826
  %v955 = vrsqrt.pop %v827
  %v956 = vrsqrt.pop %v828
  %v957 = vrsqrt.pop %v829
  %v958 = vrsqrt.pop %v830
  %v959 = vrsqrt.pop %v831
  %v960 = vrsqrt.pop %v832
  %v961 = vrsqrt.pop %v833
  %v962 = vrsqrt.pop %v834
  %v963 = vrsqrt.pop %v835
  %v964 = vrsqrt.pop %v836
  %v965 = vrsqrt.pop %v837
  %v966 = vrsqrt.pop %v838
  %v967 = vrsqrt.pop %v839
  %v968 = vrsqrt.pop %v840
  %v969 = vrsqrt.pop %v841
  %v970 = vrsqrt.pop %v842
  %v971 = vrsqrt.pop %v843
  %v972 = vrsqrt.pop %v844
  %v973 = vrsqrt.pop %v845
  %v974 = vrsqrt.pop %v846
  %v975 = vrsqrt.pop %v847
  %v976 = vrsqrt.pop %v848
  %v977 = vrsqrt.pop %v849
  %v978 = vrsqrt.pop %v850
  %v979 = vrsqrt.pop %v851
  %v980 = vrsqrt.pop %v852
  %v981 = vrsqrt.pop %v853
  %v982 = vrsqrt.pop %v854
  %v983 = vrsqrt.pop %v855
  %v984 = vrsqrt.pop %v856
  %v985 = vrsqrt.pop %v857
  %v986 = vrsqrt.pop %v858
  %v987 = vrsqrt.pop %v859
  %v988 = vrsqrt.pop %v860
  %v989 = vrsqrt.pop %v861
  %v990 = vrsqrt.pop %v862
  %v991 = vrsqrt.pop %v863
  %v992 = vrsqrt.pop %v864
  %v993 = vrsqrt.pop %v865
  %v994 = vrsqrt.pop %v866
  %v995 = vrsqrt.pop %v867
  %v996 = vrsqrt.pop %v868
  %v997 = vrsqrt.pop %v869
  %v998 = vrsqrt.pop %v870
  %v999 = vrsqrt.pop %v871
  %v1000 = vrsqrt.pop %v872
  %v1001 = vrsqrt.pop %v873
  %v1002 = vrsqrt.pop %v874
  %v1003 = vrsqrt.pop %v875
  %v1004 = vrsqrt.pop %v876
  %v1005 = vrsqrt.pop %v877
  %v1006 = vrsqrt.pop %v878
  %v1007 = vrsqrt.pop %v879
  %v1008 = vrsqrt.pop %v880
  %v1009 = vrsqrt.pop %v881
  %v1010 = vrsqrt.pop %v882
  %v1011 = vrsqrt.pop %v883
  %v1012 = vrsqrt.pop %v884
  %v1013 = vrsqrt.pop %v885
  %v1014 = vrsqrt.pop %v886
  %v1015 = vrsqrt.pop %v887
  %v1016 = vrsqrt.pop %v888
  %v1017 = vrsqrt.pop %v889
  %v1018 = vrsqrt.pop %v890
  %v1019 = vrsqrt.pop %v891
  %v1020 = vrsqrt.pop %v892
  %v1021 = vrsqrt.pop %v893
  %v1022 = vrsqrt.pop %v894
  %v1023 = vrsqrt.pop %v895
  %v1024 = vrsqrt.pop %v896
  %v1025 = vrsqrt.pop %v897
  %v1026 = vrsqrt.pop %v898
  %v1027 = vrsqrt.pop %v899
  %v1028 = vrsqrt.pop %v900
  %v1029 = vrsqrt.pop %v901
  %v1030 = vrsqrt.pop %v902
  %v1031 = vrsqrt.pop %v903
  %v1032 = vrsqrt.pop %v904
  %v1033 = vrsqrt.pop %v905
  %v1034 = vrsqrt.pop %v906
  %v1035 = vrsqrt.pop %v907
  %v1036 = vmul.f32 %v11, %v908
  %v1037 = vmul.f32 %v12, %v909
  %v1038 = vmul.f32 %v13, %v910
  %v1039 = vmul.f32 %v14, %v911
  %v1040 = vmul.f32 %v15, %v912
  %v1041 = vmul.f32 %v16, %v913
  %v1042 = vmul.f32 %v17, %v914
  %v1043 = vmul.f32 %v18, %v915
  %v1044 = vmul.f32 %v19, %v916
  %v1045 = vmul.f32 %v20, %v917
  %v1046 = vmul.f32 %v21, %v918
  %v1047 = vmul.f32 %v22, %v919
  %v1048 = vmul.f32 %v23, %v920
  %v1049 = vmul.f32 %v24, %v921
  %v1050 = vmul.f32 %v25, %v922
  %v1051 = vmul.f32 %v26, %v923
  %v1052 = vmul.f32 %v27, %v924
  %v1053 = vmul.f32 %v28, %v925
  %v1054 = vmul.f32 %v29, %v926
  %v1055 = vmul.f32 %v30, %v927
  %v1056 = vmul.f32 %v31, %v928
  %v1057 = vmul.f32 %v32, %v929
  %v1058 = vmul.f32 %v33, %v930
  %v1059 = vmul.f32 %v34, %v931
  %v1060 = vmul.f32 %v35, %v932
  %v1061 = vmul.f32 %v36, %v933
  %v1062 = vmul.f32 %v37, %v934
  %v1063 = vmul.f32 %v38, %v935
  %v1064 = vmul.f32 %v39, %v936
  %v1065 = vmul.f32 %v40, %v937
  %v1066 = vmul.f32 %v41, %v938
  %v1067 = vmul.f32 %v42, %v939
  %v1068 = vmul.f32 %v43, %v940
  %v1069 = vmul.f32 %v44, %v941
  %v1070 = vmul.f32 %v45, %v942
  %v1071 = vmul.f32 %v46, %v943
  %v1072 = vmul.f32 %v47, %v944
  %v1073 = vmul.f32 %v48, %v945
  %v1074 = vmul.f32 %v49, %v946
  %v1075 = vmul.f32 %v50, %v947
  %v1076 = vmul.f32 %v51, %v948
  %v1077 = vmul.f32 %v52, %v949
  %v1078 = vmul.f32 %v53, %v950
  %v1079 = vmul.f32 %v54, %v951
  %v1080 = vmul.f32 %v55, %v952
  %v1081 = vmul.f32 %v56, %v953
  %v1082 = vmul.f32 %v57, %v954
  %v1083 = vmul.f32 %v58, %v955
  %v1084 = vmul.f32 %v59, %v956
  %v1085 = vmul.f32 %v60, %v957
  %v1086 = vmul.f32 %v61, %v958
  %v1087 = vmul.f32 %v62, %v959
  %v1088 = vmul.f32 %v63, %v960
  %v1089 = vmul.f32 %v64, %v961
  %v1090 = vmul.f32 %v65, %v962
  %v1091 = vmul.f32 %v66, %v963
  %v1092 = vmul.f32 %v67, %v964
  %v1093 = vmul.f32 %v68, %v965
  %v1094 = vmul.f32 %v69, %v966
  %v1095 = vmul.f32 %v70, %v967
  %v1096 = vmul.f32 %v71, %v968
  %v1097 = vmul.f32 %v72, %v969
  %v1098 = vmul.f32 %v73, %v970
  %v1099 = vmul.f32 %v74, %v971
  %v1100 = vmul.f32 %v75, %v972
  %v1101 = vmul.f32 %v76, %v973
  %v1102 = vmul.f32 %v77, %v974
  %v1103 = vmul.f32 %v78, %v975
  %v1104 = vmul.f32 %v79, %v976
  %v1105 = vmul.f32 %v80, %v977
  %v1106 = vmul.f32 %v81, %v978
  %v1107 = vmul.f32 %v82, %v979
  %v1108 = vmul.f32 %v83, %v980
  %v1109 = vmul.f32 %v84, %v981
  %v1110 = vmul.f32 %v85, %v982
  %v1111 = vmul.f32 %v86, %v983
  %v1112 = vmul.f32 %v87, %v984
  %v1113 = vmul.f32 %v88, %v985
  %v1114 = vmul.f32 %v89, %v986
  %v1115 = vmul.f32 %v90, %v987
  %v1116 = vmul.f32 %v91, %v988
  %v1117 = vmul.f32 %v92, %v989
  %v1118 = vmul.f32 %v93, %v990
  %v1119 = vmul.f32 %v94, %v991
  %v1120 = vmul.f32 %v95, %v992
  %v1121 = vmul.f32 %v96, %v993
  %v1122 = vmul.f32 %v97, %v994
  %v1123 = vmul.f32 %v98, %v995
  %v1124 = vmul.f32 %v99, %v996
  %v1125 = vmul.f32 %v100, %v997
  %v1126 = vmul.f32 %v101, %v998
  %v1127 = vmul.f32 %v102, %v999
  %v1128 = vmul.f32 %v103, %v1000
  %v1129 = vmul.f32 %v104, %v1001
  %v1130 = vmul.f32 %v105, %v1002
  %v1131 = vmul.f32 %v106, %v1003
  %v1132 = vmul.f32 %v107, %v1004
  %v1133 = vmul.f32 %v108, %v1005
  %v1134 = vmul.f32 %v109, %v1006
  %v1135 = vmul.f32 %v110, %v1007
  %v1136 = vmul.f32 %v111, %v1008
  %v1137 = vmul.f32 %v112, %v1009
  %v1138 = vmul.f32 %v113, %v1010
  %v1139 = vmul.f32 %v114, %v1011
  %v1140 = vmul.f32 %v115, %v1012
  %v1141 = vmul.f32 %v116, %v1013
  %v1142 = vmul.f32 %v117, %v1014
  %v1143 = vmul.f32 %v118, %v1015
  %v1144 = vmul.f32 %v119, %v1016
  %v1145 = vmul.f32 %v120, %v1017
  %v1146 = vmul.f32 %v121, %v1018
  %v1147 = vmul.f32 %v122, %v1019
  %v1148 = vmul.f32 %v123, %v1020
  %v1149 = vmul.f32 %v124, %v1021
  %v1150 = vmul.f32 %v125, %v1022
  %v1151 = vmul.f32 %v126, %v1023
  %v1152 = vmul.f32 %v127, %v1024
  %v1153 = vmul.f32 %v128, %v1025
  %v1154 = vmul.f32 %v129, %v1026
  %v1155 = vmul.f32 %v130, %v1027
  %v1156 = vmul.f32 %v131, %v1028
  %v1157 = vmul.f32 %v132, %v1029
  %v1158 = vmul.f32 %v133, %v1030
  %v1159 = vmul.f32 %v134, %v1031
  %v1160 = vmul.f32 %v135, %v1032
  %v1161 = vmul.f32 %v136, %v1033
  %v1162 = vmul.f32 %v137, %v1034
  %v1163 = vmul.f32 %v138, %v1035
  %v1164 = vld [vmem:[%s1] sm:$0x1]
  %v1166 = vlaneseq
  %v1167 = vshrl.u32 %v1166, 7
  %v1168 = vsub.s32 0, %v1167
  %v1169 = vrot.slane %v1164, %v1168
  %v1171 = vmul.f32 %v1036, %v1169
  %v1172 = vmul.f32 %v1037, %v1169
  %v1173 = vmul.f32 %v1038, %v1169
  %v1174 = vmul.f32 %v1039, %v1169
  %v1175 = vmul.f32 %v1040, %v1169
  %v1176 = vmul.f32 %v1041, %v1169
  %v1177 = vmul.f32 %v1042, %v1169
  %v1178 = vmul.f32 %v1043, %v1169
  %v1179 = vmul.f32 %v1044, %v1169
  %v1180 = vmul.f32 %v1045, %v1169
  %v1181 = vmul.f32 %v1046, %v1169
  %v1182 = vmul.f32 %v1047, %v1169
  %v1183 = vmul.f32 %v1048, %v1169
  %v1184 = vmul.f32 %v1049, %v1169
  %v1185 = vmul.f32 %v1050, %v1169
  %v1186 = vmul.f32 %v1051, %v1169
  %v1187 = vmul.f32 %v1052, %v1169
  %v1188 = vmul.f32 %v1053, %v1169
  %v1189 = vmul.f32 %v1054, %v1169
  %v1190 = vmul.f32 %v1055, %v1169
  %v1191 = vmul.f32 %v1056, %v1169
  %v1192 = vmul.f32 %v1057, %v1169
  %v1193 = vmul.f32 %v1058, %v1169
  %v1194 = vmul.f32 %v1059, %v1169
  %v1195 = vmul.f32 %v1060, %v1169
  %v1196 = vmul.f32 %v1061, %v1169
  %v1197 = vmul.f32 %v1062, %v1169
  %v1198 = vmul.f32 %v1063, %v1169
  %v1199 = vmul.f32 %v1064, %v1169
  %v1200 = vmul.f32 %v1065, %v1169
  %v1201 = vmul.f32 %v1066, %v1169
  %v1202 = vmul.f32 %v1067, %v1169
  %v1203 = vmul.f32 %v1068, %v1169
  %v1204 = vmul.f32 %v1069, %v1169
  %v1205 = vmul.f32 %v1070, %v1169
  %v1206 = vmul.f32 %v1071, %v1169
  %v1207 = vmul.f32 %v1072, %v1169
  %v1208 = vmul.f32 %v1073, %v1169
  %v1209 = vmul.f32 %v1074, %v1169
  %v1210 = vmul.f32 %v1075, %v1169
  %v1211 = vmul.f32 %v1076, %v1169
  %v1212 = vmul.f32 %v1077, %v1169
  %v1213 = vmul.f32 %v1078, %v1169
  %v1214 = vmul.f32 %v1079, %v1169
  %v1215 = vmul.f32 %v1080, %v1169
  %v1216 = vmul.f32 %v1081, %v1169
  %v1217 = vmul.f32 %v1082, %v1169
  %v1218 = vmul.f32 %v1083, %v1169
  %v1219 = vmul.f32 %v1084, %v1169
  %v1220 = vmul.f32 %v1085, %v1169
  %v1221 = vmul.f32 %v1086, %v1169
  %v1222 = vmul.f32 %v1087, %v1169
  %v1223 = vmul.f32 %v1088, %v1169
  %v1224 = vmul.f32 %v1089, %v1169
  %v1225 = vmul.f32 %v1090, %v1169
  %v1226 = vmul.f32 %v1091, %v1169
  %v1227 = vmul.f32 %v1092, %v1169
  %v1228 = vmul.f32 %v1093, %v1169
  %v1229 = vmul.f32 %v1094, %v1169
  %v1230 = vmul.f32 %v1095, %v1169
  %v1231 = vmul.f32 %v1096, %v1169
  %v1232 = vmul.f32 %v1097, %v1169
  %v1233 = vmul.f32 %v1098, %v1169
  %v1234 = vmul.f32 %v1099, %v1169
  %v1235 = vmul.f32 %v1100, %v1169
  %v1236 = vmul.f32 %v1101, %v1169
  %v1237 = vmul.f32 %v1102, %v1169
  %v1238 = vmul.f32 %v1103, %v1169
  %v1239 = vmul.f32 %v1104, %v1169
  %v1240 = vmul.f32 %v1105, %v1169
  %v1241 = vmul.f32 %v1106, %v1169
  %v1242 = vmul.f32 %v1107, %v1169
  %v1243 = vmul.f32 %v1108, %v1169
  %v1244 = vmul.f32 %v1109, %v1169
  %v1245 = vmul.f32 %v1110, %v1169
  %v1246 = vmul.f32 %v1111, %v1169
  %v1247 = vmul.f32 %v1112, %v1169
  %v1248 = vmul.f32 %v1113, %v1169
  %v1249 = vmul.f32 %v1114, %v1169
  %v1250 = vmul.f32 %v1115, %v1169
  %v1251 = vmul.f32 %v1116, %v1169
  %v1252 = vmul.f32 %v1117, %v1169
  %v1253 = vmul.f32 %v1118, %v1169
  %v1254 = vmul.f32 %v1119, %v1169
  %v1255 = vmul.f32 %v1120, %v1169
  %v1256 = vmul.f32 %v1121, %v1169
  %v1257 = vmul.f32 %v1122, %v1169
  %v1258 = vmul.f32 %v1123, %v1169
  %v1259 = vmul.f32 %v1124, %v1169
  %v1260 = vmul.f32 %v1125, %v1169
  %v1261 = vmul.f32 %v1126, %v1169
  %v1262 = vmul.f32 %v1127, %v1169
  %v1263 = vmul.f32 %v1128, %v1169
  %v1264 = vmul.f32 %v1129, %v1169
  %v1265 = vmul.f32 %v1130, %v1169
  %v1266 = vmul.f32 %v1131, %v1169
  %v1267 = vmul.f32 %v1132, %v1169
  %v1268 = vmul.f32 %v1133, %v1169
  %v1269 = vmul.f32 %v1134, %v1169
  %v1270 = vmul.f32 %v1135, %v1169
  %v1271 = vmul.f32 %v1136, %v1169
  %v1272 = vmul.f32 %v1137, %v1169
  %v1273 = vmul.f32 %v1138, %v1169
  %v1274 = vmul.f32 %v1139, %v1169
  %v1275 = vmul.f32 %v1140, %v1169
  %v1276 = vmul.f32 %v1141, %v1169
  %v1277 = vmul.f32 %v1142, %v1169
  %v1278 = vmul.f32 %v1143, %v1169
  %v1279 = vmul.f32 %v1144, %v1169
  %v1280 = vmul.f32 %v1145, %v1169
  %v1281 = vmul.f32 %v1146, %v1169
  %v1282 = vmul.f32 %v1147, %v1169
  %v1283 = vmul.f32 %v1148, %v1169
  %v1284 = vmul.f32 %v1149, %v1169
  %v1285 = vmul.f32 %v1150, %v1169
  %v1286 = vmul.f32 %v1151, %v1169
  %v1287 = vmul.f32 %v1152, %v1169
  %v1288 = vmul.f32 %v1153, %v1169
  %v1289 = vmul.f32 %v1154, %v1169
  %v1290 = vmul.f32 %v1155, %v1169
  %v1291 = vmul.f32 %v1156, %v1169
  %v1292 = vmul.f32 %v1157, %v1169
  %v1293 = vmul.f32 %v1158, %v1169
  %v1294 = vmul.f32 %v1159, %v1169
  %v1295 = vmul.f32 %v1160, %v1169
  %v1296 = vmul.f32 %v1161, %v1169
  %v1297 = vmul.f32 %v1162, %v1169
  %v1298 = vmul.f32 %v1163, %v1169
  %1299 = vst.msk [vmem:[%s2] sm:$0xff] %vm267, %v1171
  %1300 = vst.msk [vmem:[%s2 + $0x8] sm:$0xff] %vm267, %v1172
  %1301 = vst.msk [vmem:[%s2 + $0x10] sm:$0xff] %vm267, %v1173
  %1302 = vst.msk [vmem:[%s2 + $0x18] sm:$0xff] %vm267, %v1174
  %1303 = vst.msk [vmem:[%s2 + $0x20] sm:$0xff] %vm267, %v1175
  %1304 = vst.msk [vmem:[%s2 + $0x28] sm:$0xff] %vm267, %v1176
  %1305 = vst.msk [vmem:[%s2 + $0x30] sm:$0xff] %vm267, %v1177
  %1306 = vst.msk [vmem:[%s2 + $0x38] sm:$0xff] %vm267, %v1178
  %1307 = vst.msk [vmem:[%s2 + $0x40] sm:$0xff] %vm267, %v1179
  %1308 = vst.msk [vmem:[%s2 + $0x48] sm:$0xff] %vm267, %v1180
  %1309 = vst.msk [vmem:[%s2 + $0x50] sm:$0xff] %vm267, %v1181
  %1310 = vst.msk [vmem:[%s2 + $0x58] sm:$0xff] %vm267, %v1182
  %1311 = vst.msk [vmem:[%s2 + $0x60] sm:$0xff] %vm267, %v1183
  %1312 = vst.msk [vmem:[%s2 + $0x68] sm:$0xff] %vm267, %v1184
  %1313 = vst.msk [vmem:[%s2 + $0x70] sm:$0xff] %vm267, %v1185
  %1314 = vst.msk [vmem:[%s2 + $0x78] sm:$0xff] %vm267, %v1186
  %1315 = vst.msk [vmem:[%s2 + $0x80] sm:$0xff] %vm267, %v1187
  %1316 = vst.msk [vmem:[%s2 + $0x88] sm:$0xff] %vm267, %v1188
  %1317 = vst.msk [vmem:[%s2 + $0x90] sm:$0xff] %vm267, %v1189
  %1318 = vst.msk [vmem:[%s2 + $0x98] sm:$0xff] %vm267, %v1190
  %1319 = vst.msk [vmem:[%s2 + $0xa0] sm:$0xff] %vm267, %v1191
  %1320 = vst.msk [vmem:[%s2 + $0xa8] sm:$0xff] %vm267, %v1192
  %1321 = vst.msk [vmem:[%s2 + $0xb0] sm:$0xff] %vm267, %v1193
  %1322 = vst.msk [vmem:[%s2 + $0xb8] sm:$0xff] %vm267, %v1194
  %1323 = vst.msk [vmem:[%s2 + $0xc0] sm:$0xff] %vm267, %v1195
  %1324 = vst.msk [vmem:[%s2 + $0xc8] sm:$0xff] %vm267, %v1196
  %1325 = vst.msk [vmem:[%s2 + $0xd0] sm:$0xff] %vm267, %v1197
  %1326 = vst.msk [vmem:[%s2 + $0xd8] sm:$0xff] %vm267, %v1198
  %1327 = vst.msk [vmem:[%s2 + $0xe0] sm:$0xff] %vm267, %v1199
  %1328 = vst.msk [vmem:[%s2 + $0xe8] sm:$0xff] %vm267, %v1200
  %1329 = vst.msk [vmem:[%s2 + $0xf0] sm:$0xff] %vm267, %v1201
  %1330 = vst.msk [vmem:[%s2 + $0xf8] sm:$0xff] %vm267, %v1202
  %1331 = vst.msk [vmem:[%s2 + $0x100] sm:$0xff] %vm267, %v1203
  %1332 = vst.msk [vmem:[%s2 + $0x108] sm:$0xff] %vm267, %v1204
  %1333 = vst.msk [vmem:[%s2 + $0x110] sm:$0xff] %vm267, %v1205
  %1334 = vst.msk [vmem:[%s2 + $0x118] sm:$0xff] %vm267, %v1206
  %1335 = vst.msk [vmem:[%s2 + $0x120] sm:$0xff] %vm267, %v1207
  %1336 = vst.msk [vmem:[%s2 + $0x128] sm:$0xff] %vm267, %v1208
  %1337 = vst.msk [vmem:[%s2 + $0x130] sm:$0xff] %vm267, %v1209
  %1338 = vst.msk [vmem:[%s2 + $0x138] sm:$0xff] %vm267, %v1210
  %1339 = vst.msk [vmem:[%s2 + $0x140] sm:$0xff] %vm267, %v1211
  %1340 = vst.msk [vmem:[%s2 + $0x148] sm:$0xff] %vm267, %v1212
  %1341 = vst.msk [vmem:[%s2 + $0x150] sm:$0xff] %vm267, %v1213
  %1342 = vst.msk [vmem:[%s2 + $0x158] sm:$0xff] %vm267, %v1214
  %1343 = vst.msk [vmem:[%s2 + $0x160] sm:$0xff] %vm267, %v1215
  %1344 = vst.msk [vmem:[%s2 + $0x168] sm:$0xff] %vm267, %v1216
  %1345 = vst.msk [vmem:[%s2 + $0x170] sm:$0xff] %vm267, %v1217
  %1346 = vst.msk [vmem:[%s2 + $0x178] sm:$0xff] %vm267, %v1218
  %1347 = vst.msk [vmem:[%s2 + $0x180] sm:$0xff] %vm267, %v1219
  %1348 = vst.msk [vmem:[%s2 + $0x188] sm:$0xff] %vm267, %v1220
  %1349 = vst.msk [vmem:[%s2 + $0x190] sm:$0xff] %vm267, %v1221
  %1350 = vst.msk [vmem:[%s2 + $0x198] sm:$0xff] %vm267, %v1222
  %1351 = vst.msk [vmem:[%s2 + $0x1a0] sm:$0xff] %vm267, %v1223
  %1352 = vst.msk [vmem:[%s2 + $0x1a8] sm:$0xff] %vm267, %v1224
  %1353 = vst.msk [vmem:[%s2 + $0x1b0] sm:$0xff] %vm267, %v1225
  %1354 = vst.msk [vmem:[%s2 + $0x1b8] sm:$0xff] %vm267, %v1226
  %1355 = vst.msk [vmem:[%s2 + $0x1c0] sm:$0xff] %vm267, %v1227
  %1356 = vst.msk [vmem:[%s2 + $0x1c8] sm:$0xff] %vm267, %v1228
  %1357 = vst.msk [vmem:[%s2 + $0x1d0] sm:$0xff] %vm267, %v1229
  %1358 = vst.msk [vmem:[%s2 + $0x1d8] sm:$0xff] %vm267, %v1230
  %1359 = vst.msk [vmem:[%s2 + $0x1e0] sm:$0xff] %vm267, %v1231
  %1360 = vst.msk [vmem:[%s2 + $0x1e8] sm:$0xff] %vm267, %v1232
  %1361 = vst.msk [vmem:[%s2 + $0x1f0] sm:$0xff] %vm267, %v1233
  %1362 = vst.msk [vmem:[%s2 + $0x1f8] sm:$0xff] %vm267, %v1234
  %1363 = vst.msk [vmem:[%s2 + $0x200] sm:$0xff] %vm267, %v1235
  %1364 = vst.msk [vmem:[%s2 + $0x208] sm:$0xff] %vm267, %v1236
  %1365 = vst.msk [vmem:[%s2 + $0x210] sm:$0xff] %vm267, %v1237
  %1366 = vst.msk [vmem:[%s2 + $0x218] sm:$0xff] %vm267, %v1238
  %1367 = vst.msk [vmem:[%s2 + $0x220] sm:$0xff] %vm267, %v1239
  %1368 = vst.msk [vmem:[%s2 + $0x228] sm:$0xff] %vm267, %v1240
  %1369 = vst.msk [vmem:[%s2 + $0x230] sm:$0xff] %vm267, %v1241
  %1370 = vst.msk [vmem:[%s2 + $0x238] sm:$0xff] %vm267, %v1242
  %1371 = vst.msk [vmem:[%s2 + $0x240] sm:$0xff] %vm267, %v1243
  %1372 = vst.msk [vmem:[%s2 + $0x248] sm:$0xff] %vm267, %v1244
  %1373 = vst.msk [vmem:[%s2 + $0x250] sm:$0xff] %vm267, %v1245
  %1374 = vst.msk [vmem:[%s2 + $0x258] sm:$0xff] %vm267, %v1246
  %1375 = vst.msk [vmem:[%s2 + $0x260] sm:$0xff] %vm267, %v1247
  %1376 = vst.msk [vmem:[%s2 + $0x268] sm:$0xff] %vm267, %v1248
  %1377 = vst.msk [vmem:[%s2 + $0x270] sm:$0xff] %vm267, %v1249
  %1378 = vst.msk [vmem:[%s2 + $0x278] sm:$0xff] %vm267, %v1250
  %1379 = vst.msk [vmem:[%s2 + $0x280] sm:$0xff] %vm267, %v1251
  %1380 = vst.msk [vmem:[%s2 + $0x288] sm:$0xff] %vm267, %v1252
  %1381 = vst.msk [vmem:[%s2 + $0x290] sm:$0xff] %vm267, %v1253
  %1382 = vst.msk [vmem:[%s2 + $0x298] sm:$0xff] %vm267, %v1254
  %1383 = vst.msk [vmem:[%s2 + $0x2a0] sm:$0xff] %vm267, %v1255
  %1384 = vst.msk [vmem:[%s2 + $0x2a8] sm:$0xff] %vm267, %v1256
  %1385 = vst.msk [vmem:[%s2 + $0x2b0] sm:$0xff] %vm267, %v1257
  %1386 = vst.msk [vmem:[%s2 + $0x2b8] sm:$0xff] %vm267, %v1258
  %1387 = vst.msk [vmem:[%s2 + $0x2c0] sm:$0xff] %vm267, %v1259
  %1388 = vst.msk [vmem:[%s2 + $0x2c8] sm:$0xff] %vm267, %v1260
  %1389 = vst.msk [vmem:[%s2 + $0x2d0] sm:$0xff] %vm267, %v1261
  %1390 = vst.msk [vmem:[%s2 + $0x2d8] sm:$0xff] %vm267, %v1262
  %1391 = vst.msk [vmem:[%s2 + $0x2e0] sm:$0xff] %vm267, %v1263
  %1392 = vst.msk [vmem:[%s2 + $0x2e8] sm:$0xff] %vm267, %v1264
  %1393 = vst.msk [vmem:[%s2 + $0x2f0] sm:$0xff] %vm267, %v1265
  %1394 = vst.msk [vmem:[%s2 + $0x2f8] sm:$0xff] %vm267, %v1266
  %1395 = vst.msk [vmem:[%s2 + $0x300] sm:$0xff] %vm267, %v1267
  %1396 = vst.msk [vmem:[%s2 + $0x308] sm:$0xff] %vm267, %v1268
  %1397 = vst.msk [vmem:[%s2 + $0x310] sm:$0xff] %vm267, %v1269
  %1398 = vst.msk [vmem:[%s2 + $0x318] sm:$0xff] %vm267, %v1270
  %1399 = vst.msk [vmem:[%s2 + $0x320] sm:$0xff] %vm267, %v1271
  %1400 = vst.msk [vmem:[%s2 + $0x328] sm:$0xff] %vm267, %v1272
  %1401 = vst.msk [vmem:[%s2 + $0x330] sm:$0xff] %vm267, %v1273
  %1402 = vst.msk [vmem:[%s2 + $0x338] sm:$0xff] %vm267, %v1274
  %1403 = vst.msk [vmem:[%s2 + $0x340] sm:$0xff] %vm267, %v1275
  %1404 = vst.msk [vmem:[%s2 + $0x348] sm:$0xff] %vm267, %v1276
  %1405 = vst.msk [vmem:[%s2 + $0x350] sm:$0xff] %vm267, %v1277
  %1406 = vst.msk [vmem:[%s2 + $0x358] sm:$0xff] %vm267, %v1278
  %1407 = vst.msk [vmem:[%s2 + $0x360] sm:$0xff] %vm267, %v1279
  %1408 = vst.msk [vmem:[%s2 + $0x368] sm:$0xff] %vm267, %v1280
  %1409 = vst.msk [vmem:[%s2 + $0x370] sm:$0xff] %vm267, %v1281
  %1410 = vst.msk [vmem:[%s2 + $0x378] sm:$0xff] %vm267, %v1282
  %1411 = vst.msk [vmem:[%s2 + $0x380] sm:$0xff] %vm267, %v1283
  %1412 = vst.msk [vmem:[%s2 + $0x388] sm:$0xff] %vm267, %v1284
  %1413 = vst.msk [vmem:[%s2 + $0x390] sm:$0xff] %vm267, %v1285
  %1414 = vst.msk [vmem:[%s2 + $0x398] sm:$0xff] %vm267, %v1286
  %1415 = vst.msk [vmem:[%s2 + $0x3a0] sm:$0xff] %vm267, %v1287
  %1416 = vst.msk [vmem:[%s2 + $0x3a8] sm:$0xff] %vm267, %v1288
  %1417 = vst.msk [vmem:[%s2 + $0x3b0] sm:$0xff] %vm267, %v1289
  %1418 = vst.msk [vmem:[%s2 + $0x3b8] sm:$0xff] %vm267, %v1290
  %1419 = vst.msk [vmem:[%s2 + $0x3c0] sm:$0xff] %vm267, %v1291
  %1420 = vst.msk [vmem:[%s2 + $0x3c8] sm:$0xff] %vm267, %v1292
  %1421 = vst.msk [vmem:[%s2 + $0x3d0] sm:$0xff] %vm267, %v1293
  %1422 = vst.msk [vmem:[%s2 + $0x3d8] sm:$0xff] %vm267, %v1294
  %1423 = vst.msk [vmem:[%s2 + $0x3e0] sm:$0xff] %vm267, %v1295
  %1424 = vst.msk [vmem:[%s2 + $0x3e8] sm:$0xff] %vm267, %v1296
  %1425 = vst.msk [vmem:[%s2 + $0x3f0] sm:$0xff] %vm267, %v1297
  %1426 = vst.msk [vmem:[%s2 + $0x3f8] sm:$0xff] %vm267, %v1298
  // Predicated region
  $region10: #{tpu_custom_call.1} parent=0 // pred_check
    _
  $region11: #{tpu_custom_call.1} parent=0 // pred_check_branch
    %1428 = sbr.rel (0) target = $region13
  $region12: #{tpu_custom_call.1} parent=0 // pred_region
    _
  $region13: #{tpu_custom_call.1} parent=0 // pred_fallthru
    _
  // Predicated region
  $region14: #{tpu_custom_call.1} parent=0 // pred_check
    _
  $region15: #{tpu_custom_call.1} parent=0 // pred_check_branch
    %1430 = sbr.rel (0) target = $region17
  $region16: #{tpu_custom_call.1} parent=0 // pred_region
    _
  $region17: #{tpu_custom_call.1} parent=0 // pred_fallthru
    _

</llo_original>
